<compile_context>
chip_gen: v7x
topology: tpu7x:2x2x1
jax: 0.10.0
libtpu: 0.0.40
codegen_flags: <defaults>
</compile_context>

<pallas_src>
import math

import jax
import jax.numpy as jnp
import numpy as np
from jax import lax
from jax.experimental import pallas as pl
from jax.experimental.pallas import tpu as pltpu


def _round_up(x, m):
    return ((x + m - 1) // m) * m


# ----------------------------------------------------------------------------
# Pallas kernel: time-chunked LSTM recurrence (batch-chunk x time-chunk grid)
# ----------------------------------------------------------------------------
def lstm_kernel(xp_ref, whh_ref, out_ref, h_scr, c_scr):
    """One grid step == Tb LSTM time steps for one batch chunk.

    xp_ref : [Tb, Bb, 4*Hp] bf16  precomputed input projection (+ bias), gate-padded
    whh_ref: [Hp, 4*Hp]     bf16  recurrent weight W_hh^T, gate-padded, (i,f,o,g)
    out_ref: [Bb, Tb, Hp]   f32   hidden states, batch-major, lane-dense
    h_scr, c_scr : [Bb, Hp] f32   recurrent state, persists across time chunks
    """
    @pl.when(pl.program_id(1) == 0)          # first time chunk of this batch chunk
    def _():
        h_scr[...] = jnp.zeros_like(h_scr)
        c_scr[...] = jnp.zeros_like(c_scr)

    whh = whh_ref[...]                        # hoisted: loaded once per grid step
    Hp = h_scr.shape[1]
    Tb = xp_ref.shape[0]

    def step(t, carry):
        h_prev, c_prev = carry                # vreg-resident carry (no VMEM round trip)
        # gates = x_proj_t + h_{t-1} @ W_hh^T  (bf16 MXU operands, f32 accumulate)
        gates = xp_ref[t].astype(jnp.float32) + jnp.dot(
            h_prev.astype(jnp.bfloat16), whh,
            preferred_element_type=jnp.float32)
        # (i, f, o) share one contiguous sigmoid; g is the trailing tanh slice.
        s = jax.nn.sigmoid(gates[:, : 3 * Hp])
        g_g = jnp.tanh(gates[:, 3 * Hp:])
        i_g = s[:, 0 * Hp:1 * Hp]
        f_g = s[:, 1 * Hp:2 * Hp]
        o_g = s[:, 2 * Hp:3 * Hp]
        c_new = f_g * c_prev + i_g * g_g
        h_new = o_g * jnp.tanh(c_new)
        # Batch-major per-step store: lane-dense (Hp=128), off the latency chain.
        out_ref[:, pl.ds(t, 1), :] = h_new[:, None, :]
        return (h_new, c_new)

    h_fin, c_fin = lax.fori_loop(0, Tb, step, (h_scr[...], c_scr[...]), unroll=True)
    h_scr[...] = h_fin                        # single writeback per chunk
    c_scr[...] = c_fin


# ----------------------------------------------------------------------------
# Parameter preparation (done once, outside the per-forward jit)
# ----------------------------------------------------------------------------
def prepare_params(raw, hidden_size):
    """Fuse + pad raw PyTorch-shaped params into kernel-friendly tensors."""
    H = hidden_size
    Hp = max(128, _round_up(H, 128))
    # PyTorch gate order (i, f, g, o)  ->  kernel order (i, f, o, g)
    gate_order = jnp.array([0, 1, 3, 2], dtype=jnp.int32)

    w_emb = raw["w_emb"].astype(jnp.float32)                 # [ntoken, E]
    w_ih = raw["w_ih"].astype(jnp.float32)                   # [4H, E]
    w_hh = raw["w_hh"].astype(jnp.float32)                   # [4H, H]
    bias = (raw["b_ih"] + raw["b_hh"]).astype(jnp.float32)   # [4H]

    # proj_table = w_emb @ W_ih^T + b  -> [ntoken, 4H]; full-precision one-time build.
    proj = jnp.dot(w_emb, w_ih.T, precision=lax.Precision.HIGHEST) + bias[None, :]
    proj = proj.reshape(-1, 4, H)[:, gate_order, :]
    proj = jnp.pad(proj, ((0, 0), (0, 0), (0, Hp - H))).reshape(-1, 4 * Hp)

    # W_hh^T [H, 4H] -> gate-reordered, gate-padded [Hp, 4*Hp] bf16 (padded rows 0).
    whh_t = w_hh.T.reshape(H, 4, H)[:, gate_order, :]
    whh_t = jnp.pad(whh_t, ((0, Hp - H), (0, 0), (0, Hp - H))).reshape(Hp, 4 * Hp)

    return {
        "proj_table": proj.astype(jnp.bfloat16),  # [ntoken, 4*Hp] bf16
        "whh_p": whh_t.astype(jnp.bfloat16),      # [Hp, 4*Hp]     bf16
    }


# ----------------------------------------------------------------------------
# Forward wrapper
# ----------------------------------------------------------------------------
def instruction_encoder_forward(insts, insts_len, kparams, *, hidden_size,
                                time_block=32, batch_blocks=1):
    """
    insts     : int32 [B, T] token ids
    insts_len : int32 [B]    valid lengths
    returns   : (insts_enc [B, T, H] f32, insts_mask [B, T] f32)
    """
    proj_table = kparams["proj_table"]            # [ntoken, 4*Hp] bf16
    whh_p = kparams["whh_p"]                      # [Hp, 4*Hp]     bf16

    B, T = insts.shape
    Hp = whh_p.shape[0]
    G = whh_p.shape[1]                            # 4*Hp

    # Pad batch to a sublane multiple so per-step compute/stores are full-sublane.
    B_pad = max(8, _round_up(B, 8))
    # Optional parallel batch split (v7x: 2 TensorCores). Must keep 8-row chunks.
    if batch_blocks < 1 or B_pad % batch_blocks or (B_pad // batch_blocks) % 8:
        batch_blocks = 1
    Bb = B_pad // batch_blocks

    # Time chunk size (multiple of 8 keeps the output block sublane-aligned).
    Tb = _round_up(min(time_block, T), 8)
    n_chunks = pl.cdiv(T, Tb)
    T_pad = n_chunks * Tb

    insts_p = insts
    if B_pad != B:
        insts_p = jnp.pad(insts, ((0, B_pad - B), (0, 0)))
    # Gather the precomputed projection directly time-major (no transpose pass).
    x_tm = jnp.take(proj_table, insts_p.T, axis=0)          # [T, B_pad, G] bf16
    if T_pad != T:
        # Padded steps come AFTER all real steps -> real outputs unaffected.
        x_tm = jnp.pad(x_tm, ((0, T_pad - T), (0, 0), (0, 0)))

    # VMEM budget derived from the actual double-buffered blocks (v7x-safe cap).
    vmem_need = (2 * Tb * Bb * G * 2          # input blocks (bf16, double-buffered)
                 + 2 * Bb * Tb * Hp * 4       # output blocks (f32, double-buffered)
                 + 2 * Hp * G * 2             # whh (double-buffered)
                 + 2 * Bb * Hp * 4)           # h/c scratch
    vmem_limit = int(min(96 * 1024 * 1024, max(32 * 1024 * 1024, 2 * vmem_need)))

    out_bm = pl.pallas_call(
        lstm_kernel,
        out_shape=jax.ShapeDtypeStruct((B_pad, T_pad, Hp), jnp.float32),
        grid_spec=pltpu.PrefetchScalarGridSpec(
            num_scalar_prefetch=0,
            grid=(batch_blocks, n_chunks),
            in_specs=[
                pl.BlockSpec((Tb, Bb, G), lambda bc, tc: (tc, bc, 0)),
                # TODO(synk): once Hp > 128, single-buffer this grid-invariant weight
                # (pipeline_mode=pl.Buffered(1)) to avoid wasting VMEM (v7x: 64 MiB/TC).
                pl.BlockSpec((Hp, G), lambda bc, tc: (0, 0)),
            ],
            out_specs=pl.BlockSpec((Bb, Tb, Hp), lambda bc, tc: (bc, tc, 0)),
            scratch_shapes=[
                pltpu.VMEM((Bb, Hp), jnp.float32),   # h state (f32)
                pltpu.VMEM((Bb, Hp), jnp.float32),   # c state (f32)
            ],
        ),
        compiler_params=pltpu.CompilerParams(
            # Batch chunks are independent (parallel, v7x 2-TC); time is serial.
            dimension_semantics=("parallel", "arbitrary"),
            vmem_limit_bytes=vmem_limit,
        ),
    )(x_tm, whh_p)

    # Output is already batch-major; just slice off batch/time/lane padding.
    insts_enc = out_bm[:B, :T, :hidden_size]                 # [B, T, H]

    # Mask in plain JAX: trivial compare, not worth a pallas_call.
    insts_mask = (jnp.arange(T, dtype=jnp.int32)[None, :]
                  < insts_len.astype(jnp.int32)[:, None]).astype(jnp.float32)
    return insts_enc, insts_mask


# ----------------------------------------------------------------------------
# Deterministic parameter initialization (matches PyTorch module shapes)
# ----------------------------------------------------------------------------
def init_params(key, ntoken, hidden_size, emb_dim=300):
    k_emb, k_wih, k_whh, k_bih, k_bhh = jax.random.split(key, 5)
    stdv = 1.0 / math.sqrt(hidden_size)
    return {
        "w_emb": jax.random.normal(k_emb, (ntoken, emb_dim), jnp.float32),
        "w_ih": jax.random.uniform(k_wih, (4 * hidden_size, emb_dim), jnp.float32, -stdv, stdv),
        "w_hh": jax.random.uniform(k_whh, (4 * hidden_size, hidden_size), jnp.float32, -stdv, stdv),
        "b_ih": jax.random.uniform(k_bih, (4 * hidden_size,), jnp.float32, -stdv, stdv),
        "b_hh": jax.random.uniform(k_bhh, (4 * hidden_size,), jnp.float32, -stdv, stdv),
    }


# ----------------------------------------------------------------------------
# References
# ----------------------------------------------------------------------------
def reference_forward_f32(insts, insts_len, raw):
    """Pure-f32 lax.scan LSTM == PyTorch semantics (the spec)."""
    emb = jnp.take(raw["w_emb"], insts, axis=0)            # [B, T, E]
    B, T, _ = emb.shape
    H = raw["w_hh"].shape[1]
    wih_T = raw["w_ih"].T
    whh_T = raw["w_hh"].T
    bias = (raw["b_ih"] + raw["b_hh"])[None, :]

    def step(carry, x_t):
        h, c = carry
        gates = x_t @ wih_T + h @ whh_T + bias
        i = jax.nn.sigmoid(gates[:, 0 * H:1 * H])
        f = jax.nn.sigmoid(gates[:, 1 * H:2 * H])
        g = jnp.tanh(gates[:, 2 * H:3 * H])
        o = jax.nn.sigmoid(gates[:, 3 * H:4 * H])
        c = f * c + i * g
        h = o * jnp.tanh(c)
        return (h, c), h

    h0 = jnp.zeros((B, H), jnp.float32)
    c0 = jnp.zeros((B, H), jnp.float32)
    _, hs = lax.scan(step, (h0, c0), jnp.transpose(emb, (1, 0, 2)))
    enc = jnp.transpose(hs, (1, 0, 2))
    mask = (jnp.arange(T)[None, :] < insts_len[:, None]).astype(jnp.float32)
    return enc, mask


def reference_forward_matched(insts, insts_len, kparams, hidden_size):
    """Reference mirroring the kernel arithmetic exactly (bf16 table + bf16 matmul,
    fused-sigmoid gate order i,f,o,g)."""
    whh = kparams["whh_p"]
    Hp = whh.shape[0]
    proj = jnp.take(kparams["proj_table"], insts, axis=0)  # [B, T, 4*Hp] bf16
    B, T, _ = proj.shape

    def step(carry, xp_t):
        h, c = carry
        gates = xp_t.astype(jnp.float32) + jnp.dot(
            h.astype(jnp.bfloat16), whh, preferred_element_type=jnp.float32)
        s = jax.nn.sigmoid(gates[:, : 3 * Hp])
        g = jnp.tanh(gates[:, 3 * Hp:])
        i = s[:, 0 * Hp:1 * Hp]
        f = s[:, 1 * Hp:2 * Hp]
        o = s[:, 2 * Hp:3 * Hp]
        c = f * c + i * g
        h = o * jnp.tanh(c)
        return (h, c), h

    h0 = jnp.zeros((B, Hp), jnp.float32)
    c0 = jnp.zeros((B, Hp), jnp.float32)
    _, hs = lax.scan(step, (h0, c0), jnp.transpose(proj, (1, 0, 2)))
    enc = jnp.transpose(hs, (1, 0, 2))[:, :, :hidden_size]
    mask = (jnp.arange(T)[None, :] < insts_len[:, None]).astype(jnp.float32)
    return enc, mask


# ----------------------------------------------------------------------------
if __name__ == "__main__":
    ntoken, hidden_size = 50, 32
    B, T = 2, 8

    key = jax.random.PRNGKey(0)
    k_params, k_tok, k_len = jax.random.split(key, 3)

    raw = init_params(k_params, ntoken, hidden_size)
    kparams = prepare_params(raw, hidden_size)

    insts = jax.random.randint(k_tok, (B, T), 0, ntoken, dtype=jnp.int32)
    insts_len = jax.random.randint(k_len, (B,), 1, T + 1, dtype=jnp.int32)

    fwd = jax.jit(instruction_encoder_forward,
                  static_argnames=("hidden_size", "time_block", "batch_blocks"))
    insts_enc, insts_mask = fwd(insts, insts_len, kparams,
                                hidden_size=hidden_size, time_block=32)
    jax.block_until_ready((insts_enc, insts_mask))

    # Tight check vs a reference that mirrors the kernel arithmetic.
    m_enc, m_mask = reference_forward_matched(insts, insts_len, kparams, hidden_size)
    np.testing.assert_allclose(np.asarray(insts_enc), np.asarray(m_enc),
                               rtol=1e-4, atol=1e-4)

    # Loose check vs the pure-f32 spec (bf16 table + bf16 recurrent matmul drift).
    f_enc, f_mask = reference_forward_f32(insts, insts_len, raw)
    np.testing.assert_allclose(np.asarray(insts_enc), np.asarray(f_enc),
                               rtol=5e-2, atol=5e-2)
    np.testing.assert_allclose(np.asarray(insts_mask), np.asarray(f_mask),
                               rtol=0, atol=0)

    print("KERNEL_OK")
</pallas_src>

<mosaic_0001>
module attributes {stable_mosaic.version = 11 : i64} {
  func.func @lstm_kernel(%arg0: i32, %arg1: i32, %arg2: memref<8x8x512xbf16, #tpu.memory_space<vmem>>, %arg3: memref<128x512xbf16, #tpu.memory_space<vmem>>, %arg4: memref<8x8x128xf32, #tpu.memory_space<vmem>>, %arg5: memref<8x128xf32, #tpu.memory_space<vmem>>, %arg6: memref<8x128xf32, #tpu.memory_space<vmem>>) attributes {dimension_semantics = [#tpu.dimension_semantics<parallel>, #tpu.dimension_semantics<arbitrary>], iteration_bounds = array<i64: 1, 1>, scalar_prefetch = 0 : i64, scratch_operands = 2 : i64, tpu.core_type = #tpu.core_type<tc>, window_params = [{transform_indices = @transform_0, window_bounds = array<i64: 8, 8, 512>}, {pipeline_mode = #tpu.pipeline_mode<synchronous>, transform_indices = @transform_1, window_bounds = array<i64: 128, 512>}, {transform_indices = @transform_2, window_bounds = array<i64: 8, 8, 128>}]} {
    %c0_i32 = arith.constant 0 : i32
    %0 = arith.cmpi eq, %arg1, %c0_i32 : i32
    %1 = arith.extui %0 : i1 to i32
    %c0_i32_0 = arith.constant 0 : i32
    %2 = arith.cmpi ne, %1, %c0_i32_0 : i32
    scf.if %2 {
      %cst_58 = arith.constant 0.000000e+00 : f32
      %216 = vector.broadcast %cst_58 : f32 to vector<8x128xf32>
      %c0_59 = arith.constant 0 : index
      %c0_60 = arith.constant 0 : index
      %217 = vector.load %arg5[%c0_59, %c0_60] : memref<8x128xf32, #tpu.memory_space<vmem>>, vector<8x128xf32>
      tpu.vector_store %arg5[%c0_59, %c0_60], %216 {strides = array<i32>} : memref<8x128xf32, #tpu.memory_space<vmem>>, vector<8x128xf32>,
      %cst_61 = arith.constant 0.000000e+00 : f32
      %218 = vector.broadcast %cst_61 : f32 to vector<8x128xf32>
      %c0_62 = arith.constant 0 : index
      %c0_63 = arith.constant 0 : index
      %219 = vector.load %arg6[%c0_62, %c0_63] : memref<8x128xf32, #tpu.memory_space<vmem>>, vector<8x128xf32>
      tpu.vector_store %arg6[%c0_62, %c0_63], %218 {strides = array<i32>} : memref<8x128xf32, #tpu.memory_space<vmem>>, vector<8x128xf32>,
    } else {
    }
    %c0 = arith.constant 0 : index
    %c0_1 = arith.constant 0 : index
    %3 = vector.load %arg3[%c0, %c0_1] : memref<128x512xbf16, #tpu.memory_space<vmem>>, vector<128x512xbf16>
    %c0_2 = arith.constant 0 : index
    %c0_3 = arith.constant 0 : index
    %4 = vector.load %arg5[%c0_2, %c0_3] : memref<8x128xf32, #tpu.memory_space<vmem>>, vector<8x128xf32>
    %c0_4 = arith.constant 0 : index
    %c0_5 = arith.constant 0 : index
    %5 = vector.load %arg6[%c0_4, %c0_5] : memref<8x128xf32, #tpu.memory_space<vmem>>, vector<8x128xf32>
    %c0_i32_6 = arith.constant 0 : i32
    %6 = arith.index_cast %c0_i32_6 : i32 to index
    %c0_7 = arith.constant 0 : index
    %c0_8 = arith.constant 0 : index
    %7 = vector.load %arg2[%6, %c0_7, %c0_8] : memref<8x8x512xbf16, #tpu.memory_space<vmem>>, vector<1x8x512xbf16>
    %8 = vector.shape_cast %7 : vector<1x8x512xbf16> to vector<8x512xbf16>
    %9 = arith.extf %8 : vector<8x512xbf16> to vector<8x512xf32>
    %10 = arith.truncf %4 : vector<8x128xf32> to vector<8x128xbf16>
    %cst = arith.constant dense<0.000000e+00> : vector<8x512xf32>
    %11 = tpu.matmul %10, %3, %cst {dimension_numbers = #tpu.dot_dimension_numbers<[1], [0], [0], [1], [0, 0, 1, 1], [], []>} : vector<8x128xbf16>, vector<128x512xbf16>, vector<8x512xf32> -> vector<8x512xf32>
    %12 = arith.addf %9, %11 : vector<8x512xf32>
    %13 = vector.extract_strided_slice %12 {offsets = [0, 0], sizes = [8, 384], strides = [1, 1]} : vector<8x512xf32> to vector<8x384xf32>
    %14 = arith.negf %13 : vector<8x384xf32>
    %15 = math.exp %14 : vector<8x384xf32>
    %cst_9 = arith.constant 1.000000e+00 : f32
    %16 = vector.broadcast %cst_9 : f32 to vector<8x384xf32>
    %17 = arith.addf %16, %15 : vector<8x384xf32>
    %18 = arith.divf %16, %17 : vector<8x384xf32>
    %19 = vector.extract_strided_slice %12 {offsets = [0, 384], sizes = [8, 128], strides = [1, 1]} : vector<8x512xf32> to vector<8x128xf32>
    %20 = math.tanh %19 : vector<8x128xf32>
    %21 = vector.extract_strided_slice %18 {offsets = [0, 0], sizes = [8, 128], strides = [1, 1]} : vector<8x384xf32> to vector<8x128xf32>
    %22 = vector.extract_strided_slice %18 {offsets = [0, 128], sizes = [8, 128], strides = [1, 1]} : vector<8x384xf32> to vector<8x128xf32>
    %23 = vector.extract_strided_slice %18 {offsets = [0, 256], sizes = [8, 128], strides = [1, 1]} : vector<8x384xf32> to vector<8x128xf32>
    %24 = arith.mulf %22, %5 : vector<8x128xf32>
    %25 = arith.mulf %21, %20 : vector<8x128xf32>
    %26 = arith.addf %24, %25 : vector<8x128xf32>
    %27 = math.tanh %26 : vector<8x128xf32>
    %28 = arith.mulf %23, %27 : vector<8x128xf32>
    %29 = vector.shape_cast %28 : vector<8x128xf32> to vector<8x1x128xf32>
    %c0_10 = arith.constant 0 : index
    %30 = arith.index_cast %c0_i32_6 : i32 to index
    %c0_11 = arith.constant 0 : index
    %31 = vector.load %arg4[%c0_10, %30, %c0_11] : memref<8x8x128xf32, #tpu.memory_space<vmem>>, vector<8x1x128xf32>
    tpu.vector_store %arg4[%c0_10, %30, %c0_11], %29 {strides = array<i32>} : memref<8x8x128xf32, #tpu.memory_space<vmem>>, vector<8x1x128xf32>,
    %c1_i32 = arith.constant 1 : i32
    %32 = arith.index_cast %c1_i32 : i32 to index
    %c0_12 = arith.constant 0 : index
    %c0_13 = arith.constant 0 : index
    %33 = vector.load %arg2[%32, %c0_12, %c0_13] : memref<8x8x512xbf16, #tpu.memory_space<vmem>>, vector<1x8x512xbf16>
    %34 = vector.shape_cast %33 : vector<1x8x512xbf16> to vector<8x512xbf16>
    %35 = arith.extf %34 : vector<8x512xbf16> to vector<8x512xf32>
    %36 = arith.truncf %28 : vector<8x128xf32> to vector<8x128xbf16>
    %cst_14 = arith.constant dense<0.000000e+00> : vector<8x512xf32>
    %37 = tpu.matmul %36, %3, %cst_14 {dimension_numbers = #tpu.dot_dimension_numbers<[1], [0], [0], [1], [0, 0, 1, 1], [], []>} : vector<8x128xbf16>, vector<128x512xbf16>, vector<8x512xf32> -> vector<8x512xf32>
    %38 = arith.addf %35, %37 : vector<8x512xf32>
    %39 = vector.extract_strided_slice %38 {offsets = [0, 0], sizes = [8, 384], strides = [1, 1]} : vector<8x512xf32> to vector<8x384xf32>
    %40 = arith.negf %39 : vector<8x384xf32>
    %41 = math.exp %40 : vector<8x384xf32>
    %cst_15 = arith.constant 1.000000e+00 : f32
    %42 = vector.broadcast %cst_15 : f32 to vector<8x384xf32>
    %43 = arith.addf %42, %41 : vector<8x384xf32>
    %44 = arith.divf %42, %43 : vector<8x384xf32>
    %45 = vector.extract_strided_slice %38 {offsets = [0, 384], sizes = [8, 128], strides = [1, 1]} : vector<8x512xf32> to vector<8x128xf32>
    %46 = math.tanh %45 : vector<8x128xf32>
    %47 = vector.extract_strided_slice %44 {offsets = [0, 0], sizes = [8, 128], strides = [1, 1]} : vector<8x384xf32> to vector<8x128xf32>
    %48 = vector.extract_strided_slice %44 {offsets = [0, 128], sizes = [8, 128], strides = [1, 1]} : vector<8x384xf32> to vector<8x128xf32>
    %49 = vector.extract_strided_slice %44 {offsets = [0, 256], sizes = [8, 128], strides = [1, 1]} : vector<8x384xf32> to vector<8x128xf32>
    %50 = arith.mulf %48, %26 : vector<8x128xf32>
    %51 = arith.mulf %47, %46 : vector<8x128xf32>
    %52 = arith.addf %50, %51 : vector<8x128xf32>
    %53 = math.tanh %52 : vector<8x128xf32>
    %54 = arith.mulf %49, %53 : vector<8x128xf32>
    %55 = vector.shape_cast %54 : vector<8x128xf32> to vector<8x1x128xf32>
    %c0_16 = arith.constant 0 : index
    %56 = arith.index_cast %c1_i32 : i32 to index
    %c0_17 = arith.constant 0 : index
    %57 = vector.load %arg4[%c0_16, %56, %c0_17] : memref<8x8x128xf32, #tpu.memory_space<vmem>>, vector<8x1x128xf32>
    tpu.vector_store %arg4[%c0_16, %56, %c0_17], %55 {strides = array<i32>} : memref<8x8x128xf32, #tpu.memory_space<vmem>>, vector<8x1x128xf32>,
    %c2_i32 = arith.constant 2 : i32
    %58 = arith.index_cast %c2_i32 : i32 to index
    %c0_18 = arith.constant 0 : index
    %c0_19 = arith.constant 0 : index
    %59 = vector.load %arg2[%58, %c0_18, %c0_19] : memref<8x8x512xbf16, #tpu.memory_space<vmem>>, vector<1x8x512xbf16>
    %60 = vector.shape_cast %59 : vector<1x8x512xbf16> to vector<8x512xbf16>
    %61 = arith.extf %60 : vector<8x512xbf16> to vector<8x512xf32>
    %62 = arith.truncf %54 : vector<8x128xf32> to vector<8x128xbf16>
    %cst_20 = arith.constant dense<0.000000e+00> : vector<8x512xf32>
    %63 = tpu.matmul %62, %3, %cst_20 {dimension_numbers = #tpu.dot_dimension_numbers<[1], [0], [0], [1], [0, 0, 1, 1], [], []>} : vector<8x128xbf16>, vector<128x512xbf16>, vector<8x512xf32> -> vector<8x512xf32>
    %64 = arith.addf %61, %63 : vector<8x512xf32>
    %65 = vector.extract_strided_slice %64 {offsets = [0, 0], sizes = [8, 384], strides = [1, 1]} : vector<8x512xf32> to vector<8x384xf32>
    %66 = arith.negf %65 : vector<8x384xf32>
    %67 = math.exp %66 : vector<8x384xf32>
    %cst_21 = arith.constant 1.000000e+00 : f32
    %68 = vector.broadcast %cst_21 : f32 to vector<8x384xf32>
    %69 = arith.addf %68, %67 : vector<8x384xf32>
    %70 = arith.divf %68, %69 : vector<8x384xf32>
    %71 = vector.extract_strided_slice %64 {offsets = [0, 384], sizes = [8, 128], strides = [1, 1]} : vector<8x512xf32> to vector<8x128xf32>
    %72 = math.tanh %71 : vector<8x128xf32>
    %73 = vector.extract_strided_slice %70 {offsets = [0, 0], sizes = [8, 128], strides = [1, 1]} : vector<8x384xf32> to vector<8x128xf32>
    %74 = vector.extract_strided_slice %70 {offsets = [0, 128], sizes = [8, 128], strides = [1, 1]} : vector<8x384xf32> to vector<8x128xf32>
    %75 = vector.extract_strided_slice %70 {offsets = [0, 256], sizes = [8, 128], strides = [1, 1]} : vector<8x384xf32> to vector<8x128xf32>
    %76 = arith.mulf %74, %52 : vector<8x128xf32>
    %77 = arith.mulf %73, %72 : vector<8x128xf32>
    %78 = arith.addf %76, %77 : vector<8x128xf32>
    %79 = math.tanh %78 : vector<8x128xf32>
    %80 = arith.mulf %75, %79 : vector<8x128xf32>
    %81 = vector.shape_cast %80 : vector<8x128xf32> to vector<8x1x128xf32>
    %c0_22 = arith.constant 0 : index
    %82 = arith.index_cast %c2_i32 : i32 to index
    %c0_23 = arith.constant 0 : index
    %83 = vector.load %arg4[%c0_22, %82, %c0_23] : memref<8x8x128xf32, #tpu.memory_space<vmem>>, vector<8x1x128xf32>
    tpu.vector_store %arg4[%c0_22, %82, %c0_23], %81 {strides = array<i32>} : memref<8x8x128xf32, #tpu.memory_space<vmem>>, vector<8x1x128xf32>,
    %c3_i32 = arith.constant 3 : i32
    %84 = arith.index_cast %c3_i32 : i32 to index
    %c0_24 = arith.constant 0 : index
    %c0_25 = arith.constant 0 : index
    %85 = vector.load %arg2[%84, %c0_24, %c0_25] : memref<8x8x512xbf16, #tpu.memory_space<vmem>>, vector<1x8x512xbf16>
    %86 = vector.shape_cast %85 : vector<1x8x512xbf16> to vector<8x512xbf16>
    %87 = arith.extf %86 : vector<8x512xbf16> to vector<8x512xf32>
    %88 = arith.truncf %80 : vector<8x128xf32> to vector<8x128xbf16>
    %cst_26 = arith.constant dense<0.000000e+00> : vector<8x512xf32>
    %89 = tpu.matmul %88, %3, %cst_26 {dimension_numbers = #tpu.dot_dimension_numbers<[1], [0], [0], [1], [0, 0, 1, 1], [], []>} : vector<8x128xbf16>, vector<128x512xbf16>, vector<8x512xf32> -> vector<8x512xf32>
    %90 = arith.addf %87, %89 : vector<8x512xf32>
    %91 = vector.extract_strided_slice %90 {offsets = [0, 0], sizes = [8, 384], strides = [1, 1]} : vector<8x512xf32> to vector<8x384xf32>
    %92 = arith.negf %91 : vector<8x384xf32>
    %93 = math.exp %92 : vector<8x384xf32>
    %cst_27 = arith.constant 1.000000e+00 : f32
    %94 = vector.broadcast %cst_27 : f32 to vector<8x384xf32>
    %95 = arith.addf %94, %93 : vector<8x384xf32>
    %96 = arith.divf %94, %95 : vector<8x384xf32>
    %97 = vector.extract_strided_slice %90 {offsets = [0, 384], sizes = [8, 128], strides = [1, 1]} : vector<8x512xf32> to vector<8x128xf32>
    %98 = math.tanh %97 : vector<8x128xf32>
    %99 = vector.extract_strided_slice %96 {offsets = [0, 0], sizes = [8, 128], strides = [1, 1]} : vector<8x384xf32> to vector<8x128xf32>
    %100 = vector.extract_strided_slice %96 {offsets = [0, 128], sizes = [8, 128], strides = [1, 1]} : vector<8x384xf32> to vector<8x128xf32>
    %101 = vector.extract_strided_slice %96 {offsets = [0, 256], sizes = [8, 128], strides = [1, 1]} : vector<8x384xf32> to vector<8x128xf32>
    %102 = arith.mulf %100, %78 : vector<8x128xf32>
    %103 = arith.mulf %99, %98 : vector<8x128xf32>
    %104 = arith.addf %102, %103 : vector<8x128xf32>
    %105 = math.tanh %104 : vector<8x128xf32>
    %106 = arith.mulf %101, %105 : vector<8x128xf32>
    %107 = vector.shape_cast %106 : vector<8x128xf32> to vector<8x1x128xf32>
    %c0_28 = arith.constant 0 : index
    %108 = arith.index_cast %c3_i32 : i32 to index
    %c0_29 = arith.constant 0 : index
    %109 = vector.load %arg4[%c0_28, %108, %c0_29] : memref<8x8x128xf32, #tpu.memory_space<vmem>>, vector<8x1x128xf32>
    tpu.vector_store %arg4[%c0_28, %108, %c0_29], %107 {strides = array<i32>} : memref<8x8x128xf32, #tpu.memory_space<vmem>>, vector<8x1x128xf32>,
    %c4_i32 = arith.constant 4 : i32
    %110 = arith.index_cast %c4_i32 : i32 to index
    %c0_30 = arith.constant 0 : index
    %c0_31 = arith.constant 0 : index
    %111 = vector.load %arg2[%110, %c0_30, %c0_31] : memref<8x8x512xbf16, #tpu.memory_space<vmem>>, vector<1x8x512xbf16>
    %112 = vector.shape_cast %111 : vector<1x8x512xbf16> to vector<8x512xbf16>
    %113 = arith.extf %112 : vector<8x512xbf16> to vector<8x512xf32>
    %114 = arith.truncf %106 : vector<8x128xf32> to vector<8x128xbf16>
    %cst_32 = arith.constant dense<0.000000e+00> : vector<8x512xf32>
    %115 = tpu.matmul %114, %3, %cst_32 {dimension_numbers = #tpu.dot_dimension_numbers<[1], [0], [0], [1], [0, 0, 1, 1], [], []>} : vector<8x128xbf16>, vector<128x512xbf16>, vector<8x512xf32> -> vector<8x512xf32>
    %116 = arith.addf %113, %115 : vector<8x512xf32>
    %117 = vector.extract_strided_slice %116 {offsets = [0, 0], sizes = [8, 384], strides = [1, 1]} : vector<8x512xf32> to vector<8x384xf32>
    %118 = arith.negf %117 : vector<8x384xf32>
    %119 = math.exp %118 : vector<8x384xf32>
    %cst_33 = arith.constant 1.000000e+00 : f32
    %120 = vector.broadcast %cst_33 : f32 to vector<8x384xf32>
    %121 = arith.addf %120, %119 : vector<8x384xf32>
    %122 = arith.divf %120, %121 : vector<8x384xf32>
    %123 = vector.extract_strided_slice %116 {offsets = [0, 384], sizes = [8, 128], strides = [1, 1]} : vector<8x512xf32> to vector<8x128xf32>
    %124 = math.tanh %123 : vector<8x128xf32>
    %125 = vector.extract_strided_slice %122 {offsets = [0, 0], sizes = [8, 128], strides = [1, 1]} : vector<8x384xf32> to vector<8x128xf32>
    %126 = vector.extract_strided_slice %122 {offsets = [0, 128], sizes = [8, 128], strides = [1, 1]} : vector<8x384xf32> to vector<8x128xf32>
    %127 = vector.extract_strided_slice %122 {offsets = [0, 256], sizes = [8, 128], strides = [1, 1]} : vector<8x384xf32> to vector<8x128xf32>
    %128 = arith.mulf %126, %104 : vector<8x128xf32>
    %129 = arith.mulf %125, %124 : vector<8x128xf32>
    %130 = arith.addf %128, %129 : vector<8x128xf32>
    %131 = math.tanh %130 : vector<8x128xf32>
    %132 = arith.mulf %127, %131 : vector<8x128xf32>
    %133 = vector.shape_cast %132 : vector<8x128xf32> to vector<8x1x128xf32>
    %c0_34 = arith.constant 0 : index
    %134 = arith.index_cast %c4_i32 : i32 to index
    %c0_35 = arith.constant 0 : index
    %135 = vector.load %arg4[%c0_34, %134, %c0_35] : memref<8x8x128xf32, #tpu.memory_space<vmem>>, vector<8x1x128xf32>
    tpu.vector_store %arg4[%c0_34, %134, %c0_35], %133 {strides = array<i32>} : memref<8x8x128xf32, #tpu.memory_space<vmem>>, vector<8x1x128xf32>,
    %c5_i32 = arith.constant 5 : i32
    %136 = arith.index_cast %c5_i32 : i32 to index
    %c0_36 = arith.constant 0 : index
    %c0_37 = arith.constant 0 : index
    %137 = vector.load %arg2[%136, %c0_36, %c0_37] : memref<8x8x512xbf16, #tpu.memory_space<vmem>>, vector<1x8x512xbf16>
    %138 = vector.shape_cast %137 : vector<1x8x512xbf16> to vector<8x512xbf16>
    %139 = arith.extf %138 : vector<8x512xbf16> to vector<8x512xf32>
    %140 = arith.truncf %132 : vector<8x128xf32> to vector<8x128xbf16>
    %cst_38 = arith.constant dense<0.000000e+00> : vector<8x512xf32>
    %141 = tpu.matmul %140, %3, %cst_38 {dimension_numbers = #tpu.dot_dimension_numbers<[1], [0], [0], [1], [0, 0, 1, 1], [], []>} : vector<8x128xbf16>, vector<128x512xbf16>, vector<8x512xf32> -> vector<8x512xf32>
    %142 = arith.addf %139, %141 : vector<8x512xf32>
    %143 = vector.extract_strided_slice %142 {offsets = [0, 0], sizes = [8, 384], strides = [1, 1]} : vector<8x512xf32> to vector<8x384xf32>
    %144 = arith.negf %143 : vector<8x384xf32>
    %145 = math.exp %144 : vector<8x384xf32>
    %cst_39 = arith.constant 1.000000e+00 : f32
    %146 = vector.broadcast %cst_39 : f32 to vector<8x384xf32>
    %147 = arith.addf %146, %145 : vector<8x384xf32>
    %148 = arith.divf %146, %147 : vector<8x384xf32>
    %149 = vector.extract_strided_slice %142 {offsets = [0, 384], sizes = [8, 128], strides = [1, 1]} : vector<8x512xf32> to vector<8x128xf32>
    %150 = math.tanh %149 : vector<8x128xf32>
    %151 = vector.extract_strided_slice %148 {offsets = [0, 0], sizes = [8, 128], strides = [1, 1]} : vector<8x384xf32> to vector<8x128xf32>
    %152 = vector.extract_strided_slice %148 {offsets = [0, 128], sizes = [8, 128], strides = [1, 1]} : vector<8x384xf32> to vector<8x128xf32>
    %153 = vector.extract_strided_slice %148 {offsets = [0, 256], sizes = [8, 128], strides = [1, 1]} : vector<8x384xf32> to vector<8x128xf32>
    %154 = arith.mulf %152, %130 : vector<8x128xf32>
    %155 = arith.mulf %151, %150 : vector<8x128xf32>
    %156 = arith.addf %154, %155 : vector<8x128xf32>
    %157 = math.tanh %156 : vector<8x128xf32>
    %158 = arith.mulf %153, %157 : vector<8x128xf32>
    %159 = vector.shape_cast %158 : vector<8x128xf32> to vector<8x1x128xf32>
    %c0_40 = arith.constant 0 : index
    %160 = arith.index_cast %c5_i32 : i32 to index
    %c0_41 = arith.constant 0 : index
    %161 = vector.load %arg4[%c0_40, %160, %c0_41] : memref<8x8x128xf32, #tpu.memory_space<vmem>>, vector<8x1x128xf32>
    tpu.vector_store %arg4[%c0_40, %160, %c0_41], %159 {strides = array<i32>} : memref<8x8x128xf32, #tpu.memory_space<vmem>>, vector<8x1x128xf32>,
    %c6_i32 = arith.constant 6 : i32
    %162 = arith.index_cast %c6_i32 : i32 to index
    %c0_42 = arith.constant 0 : index
    %c0_43 = arith.constant 0 : index
    %163 = vector.load %arg2[%162, %c0_42, %c0_43] : memref<8x8x512xbf16, #tpu.memory_space<vmem>>, vector<1x8x512xbf16>
    %164 = vector.shape_cast %163 : vector<1x8x512xbf16> to vector<8x512xbf16>
    %165 = arith.extf %164 : vector<8x512xbf16> to vector<8x512xf32>
    %166 = arith.truncf %158 : vector<8x128xf32> to vector<8x128xbf16>
    %cst_44 = arith.constant dense<0.000000e+00> : vector<8x512xf32>
    %167 = tpu.matmul %166, %3, %cst_44 {dimension_numbers = #tpu.dot_dimension_numbers<[1], [0], [0], [1], [0, 0, 1, 1], [], []>} : vector<8x128xbf16>, vector<128x512xbf16>, vector<8x512xf32> -> vector<8x512xf32>
    %168 = arith.addf %165, %167 : vector<8x512xf32>
    %169 = vector.extract_strided_slice %168 {offsets = [0, 0], sizes = [8, 384], strides = [1, 1]} : vector<8x512xf32> to vector<8x384xf32>
    %170 = arith.negf %169 : vector<8x384xf32>
    %171 = math.exp %170 : vector<8x384xf32>
    %cst_45 = arith.constant 1.000000e+00 : f32
    %172 = vector.broadcast %cst_45 : f32 to vector<8x384xf32>
    %173 = arith.addf %172, %171 : vector<8x384xf32>
    %174 = arith.divf %172, %173 : vector<8x384xf32>
    %175 = vector.extract_strided_slice %168 {offsets = [0, 384], sizes = [8, 128], strides = [1, 1]} : vector<8x512xf32> to vector<8x128xf32>
    %176 = math.tanh %175 : vector<8x128xf32>
    %177 = vector.extract_strided_slice %174 {offsets = [0, 0], sizes = [8, 128], strides = [1, 1]} : vector<8x384xf32> to vector<8x128xf32>
    %178 = vector.extract_strided_slice %174 {offsets = [0, 128], sizes = [8, 128], strides = [1, 1]} : vector<8x384xf32> to vector<8x128xf32>
    %179 = vector.extract_strided_slice %174 {offsets = [0, 256], sizes = [8, 128], strides = [1, 1]} : vector<8x384xf32> to vector<8x128xf32>
    %180 = arith.mulf %178, %156 : vector<8x128xf32>
    %181 = arith.mulf %177, %176 : vector<8x128xf32>
    %182 = arith.addf %180, %181 : vector<8x128xf32>
    %183 = math.tanh %182 : vector<8x128xf32>
    %184 = arith.mulf %179, %183 : vector<8x128xf32>
    %185 = vector.shape_cast %184 : vector<8x128xf32> to vector<8x1x128xf32>
    %c0_46 = arith.constant 0 : index
    %186 = arith.index_cast %c6_i32 : i32 to index
    %c0_47 = arith.constant 0 : index
    %187 = vector.load %arg4[%c0_46, %186, %c0_47] : memref<8x8x128xf32, #tpu.memory_space<vmem>>, vector<8x1x128xf32>
    tpu.vector_store %arg4[%c0_46, %186, %c0_47], %185 {strides = array<i32>} : memref<8x8x128xf32, #tpu.memory_space<vmem>>, vector<8x1x128xf32>,
    %c7_i32 = arith.constant 7 : i32
    %188 = arith.index_cast %c7_i32 : i32 to index
    %c0_48 = arith.constant 0 : index
    %c0_49 = arith.constant 0 : index
    %189 = vector.load %arg2[%188, %c0_48, %c0_49] : memref<8x8x512xbf16, #tpu.memory_space<vmem>>, vector<1x8x512xbf16>
    %190 = vector.shape_cast %189 : vector<1x8x512xbf16> to vector<8x512xbf16>
    %191 = arith.extf %190 : vector<8x512xbf16> to vector<8x512xf32>
    %192 = arith.truncf %184 : vector<8x128xf32> to vector<8x128xbf16>
    %cst_50 = arith.constant dense<0.000000e+00> : vector<8x512xf32>
    %193 = tpu.matmul %192, %3, %cst_50 {dimension_numbers = #tpu.dot_dimension_numbers<[1], [0], [0], [1], [0, 0, 1, 1], [], []>} : vector<8x128xbf16>, vector<128x512xbf16>, vector<8x512xf32> -> vector<8x512xf32>
    %194 = arith.addf %191, %193 : vector<8x512xf32>
    %195 = vector.extract_strided_slice %194 {offsets = [0, 0], sizes = [8, 384], strides = [1, 1]} : vector<8x512xf32> to vector<8x384xf32>
    %196 = arith.negf %195 : vector<8x384xf32>
    %197 = math.exp %196 : vector<8x384xf32>
    %cst_51 = arith.constant 1.000000e+00 : f32
    %198 = vector.broadcast %cst_51 : f32 to vector<8x384xf32>
    %199 = arith.addf %198, %197 : vector<8x384xf32>
    %200 = arith.divf %198, %199 : vector<8x384xf32>
    %201 = vector.extract_strided_slice %194 {offsets = [0, 384], sizes = [8, 128], strides = [1, 1]} : vector<8x512xf32> to vector<8x128xf32>
    %202 = math.tanh %201 : vector<8x128xf32>
    %203 = vector.extract_strided_slice %200 {offsets = [0, 0], sizes = [8, 128], strides = [1, 1]} : vector<8x384xf32> to vector<8x128xf32>
    %204 = vector.extract_strided_slice %200 {offsets = [0, 128], sizes = [8, 128], strides = [1, 1]} : vector<8x384xf32> to vector<8x128xf32>
    %205 = vector.extract_strided_slice %200 {offsets = [0, 256], sizes = [8, 128], strides = [1, 1]} : vector<8x384xf32> to vector<8x128xf32>
    %206 = arith.mulf %204, %182 : vector<8x128xf32>
    %207 = arith.mulf %203, %202 : vector<8x128xf32>
    %208 = arith.addf %206, %207 : vector<8x128xf32>
    %209 = math.tanh %208 : vector<8x128xf32>
    %210 = arith.mulf %205, %209 : vector<8x128xf32>
    %211 = vector.shape_cast %210 : vector<8x128xf32> to vector<8x1x128xf32>
    %c0_52 = arith.constant 0 : index
    %212 = arith.index_cast %c7_i32 : i32 to index
    %c0_53 = arith.constant 0 : index
    %213 = vector.load %arg4[%c0_52, %212, %c0_53] : memref<8x8x128xf32, #tpu.memory_space<vmem>>, vector<8x1x128xf32>
    tpu.vector_store %arg4[%c0_52, %212, %c0_53], %211 {strides = array<i32>} : memref<8x8x128xf32, #tpu.memory_space<vmem>>, vector<8x1x128xf32>,
    %c8_i32 = arith.constant 8 : i32
    %c0_54 = arith.constant 0 : index
    %c0_55 = arith.constant 0 : index
    %214 = vector.load %arg5[%c0_54, %c0_55] : memref<8x128xf32, #tpu.memory_space<vmem>>, vector<8x128xf32>
    tpu.vector_store %arg5[%c0_54, %c0_55], %210 {strides = array<i32>} : memref<8x128xf32, #tpu.memory_space<vmem>>, vector<8x128xf32>,
    %c0_56 = arith.constant 0 : index
    %c0_57 = arith.constant 0 : index
    %215 = vector.load %arg6[%c0_56, %c0_57] : memref<8x128xf32, #tpu.memory_space<vmem>>, vector<8x128xf32>
    tpu.vector_store %arg6[%c0_56, %c0_57], %208 {strides = array<i32>} : memref<8x128xf32, #tpu.memory_space<vmem>>, vector<8x128xf32>,
    return
  }
  func.func @transform_0(%arg0: i32, %arg1: i32) -> (i32, i32, i32) {
    %c0_i32 = arith.constant 0 : i32
    %c0_i32_0 = arith.constant 0 : i32
    return %arg1, %arg0, %c0_i32 : i32, i32, i32
  }
  func.func @transform_1(%arg0: i32, %arg1: i32) -> (i32, i32) {
    %c0_i32 = arith.constant 0 : i32
    %c0_i32_0 = arith.constant 0 : i32
    %c0_i32_1 = arith.constant 0 : i32
    return %c0_i32, %c0_i32_0 : i32, i32
  }
  func.func @transform_2(%arg0: i32, %arg1: i32) -> (i32, i32, i32) {
    %c0_i32 = arith.constant 0 : i32
    %c0_i32_0 = arith.constant 0 : i32
    return %arg0, %arg1, %c0_i32 : i32, i32, i32
  }
}

</mosaic_0001>

<llo_original>
// kernel: instruction_encoder_forward.1
$region0: #{instruction_encoder_forward.1}
  #allocation0 [shape = 'u32[]', space=smem, size = 0x4, offset = 0x4, fixed_abs, tag = 'smem constant byte address 0x4 - core index']
  #allocation1 [shape = 'u32[144,128]{1,0:T(1,128)}', space=vmem, size = 0x12000, scoped, tag = 'internal scratch']
  #allocation2 [shape = 'f32[8,128]{1,0:T(8,128)}', space=vmem, size = 0x1000, scoped, tag = 'scratch operand']
  #allocation3 [shape = 'f32[8,128]{1,0:T(8,128)}', space=vmem, size = 0x1000, scoped, tag = 'scratch operand']
  %s0 = inlined_call_operand.vmem [shape: bf16[8,8,512], index: 0, kind: input, shape index: {}]
  %s1 = inlined_call_operand.vmem [shape: bf16[128,512], index: 1, kind: input, shape index: {}]
  %s2 = inlined_call_operand.vmem [shape: f32[8,8,128], index: 2, kind: output, shape index: {}]
  %s3 = sld [smem:[#allocation0]]
  $region22: #{instruction_encoder_forward.1} parent=0
    _
  %s5 = ssub.s32 1, %s3
  %s6 = scalar_select 0, %s5, %s3
  // Predicated region
  $region2: #{instruction_encoder_forward.1} parent=0 // pred_check
    _
  $region3: #{instruction_encoder_forward.1} parent=0 // pred_check_branch
    %8 = sbr.rel (0) target = $region5
  $region4: #{instruction_encoder_forward.1} parent=0 // pred_region
    _
  $region5: #{instruction_encoder_forward.1} parent=0 // pred_fallthru
    _
  // Predicated region
  $region6: #{instruction_encoder_forward.1} parent=0 // pred_check
    _
  $region7: #{instruction_encoder_forward.1} parent=0 // pred_check_branch
    %10 = sbr.rel (0) target = $region9
  $region8: #{instruction_encoder_forward.1} parent=0 // pred_region
    _
  $region9: #{instruction_encoder_forward.1} parent=0 // pred_fallthru
    _
  %p12 = scmp.eq.s32.totalorder 0, 0
  // Predicated region
  $region10: #{instruction_encoder_forward.1} parent=0 // pred_check
    %p13 = pneg %p12
  $region11: #{instruction_encoder_forward.1} parent=0 // pred_check_branch
    %15 = sbr.rel (%p13) target = $region13
  $region12: #{instruction_encoder_forward.1} parent=0 // pred_region
    %16 = vst [vmem:[#allocation2] sm:$0xff] 0.0
    %17 = vst [vmem:[#allocation3] sm:$0xff] 0.0
  $region13: #{instruction_encoder_forward.1} parent=0 // pred_fallthru
    _
  %v18 = vld [vmem:[%s1] sm:$0xff]
  %v19 = vld [vmem:[%s1 + $0x8] sm:$0xff]
  %v20 = vld [vmem:[%s1 + $0x10] sm:$0xff]
  %v21 = vld [vmem:[%s1 + $0x18] sm:$0xff]
  %v22 = vld [vmem:[%s1 + $0x20] sm:$0xff]
  %v23 = vld [vmem:[%s1 + $0x28] sm:$0xff]
  %v24 = vld [vmem:[%s1 + $0x30] sm:$0xff]
  %v25 = vld [vmem:[%s1 + $0x38] sm:$0xff]
  %v26 = vld [vmem:[%s1 + $0x40] sm:$0xff]
  %v27 = vld [vmem:[%s1 + $0x48] sm:$0xff]
  %v28 = vld [vmem:[%s1 + $0x50] sm:$0xff]
  %v29 = vld [vmem:[%s1 + $0x58] sm:$0xff]
  %v30 = vld [vmem:[%s1 + $0x60] sm:$0xff]
  %v31 = vld [vmem:[%s1 + $0x68] sm:$0xff]
  %v32 = vld [vmem:[%s1 + $0x70] sm:$0xff]
  %v33 = vld [vmem:[%s1 + $0x78] sm:$0xff]
  %v34 = vld [vmem:[%s1 + $0x80] sm:$0xff]
  %v35 = vld [vmem:[%s1 + $0x88] sm:$0xff]
  %v36 = vld [vmem:[%s1 + $0x90] sm:$0xff]
  %v37 = vld [vmem:[%s1 + $0x98] sm:$0xff]
  %v38 = vld [vmem:[%s1 + $0xa0] sm:$0xff]
  %v39 = vld [vmem:[%s1 + $0xa8] sm:$0xff]
  %v40 = vld [vmem:[%s1 + $0xb0] sm:$0xff]
  %v41 = vld [vmem:[%s1 + $0xb8] sm:$0xff]
  %v42 = vld [vmem:[%s1 + $0xc0] sm:$0xff]
  %v43 = vld [vmem:[%s1 + $0xc8] sm:$0xff]
  %v44 = vld [vmem:[%s1 + $0xd0] sm:$0xff]
  %v45 = vld [vmem:[%s1 + $0xd8] sm:$0xff]
  %v46 = vld [vmem:[%s1 + $0xe0] sm:$0xff]
  %v47 = vld [vmem:[%s1 + $0xe8] sm:$0xff]
  %v48 = vld [vmem:[%s1 + $0xf0] sm:$0xff]
  %v49 = vld [vmem:[%s1 + $0xf8] sm:$0xff]
  %v50 = vld [vmem:[#allocation2] sm:$0xff]
  %v51 = vld [vmem:[#allocation3] sm:$0xff]
  %v52 = vld [vmem:[%s0] sm:$0xff]
  %v53 = vld [vmem:[%s0 + $0x8] sm:$0xff]
  %v54 = vunpack.c.l.bf16 %v52
  %v55 = vunpack.c.h.bf16 %v52
  %v56 = vunpack.c.l.bf16 %v53
  %v57 = vunpack.c.h.bf16 %v53
  %v58 = vpack.c.bf16 %v50, %v50
  %v91 = vunpack.c.l.b16 %v18
  %v92 = vunpack.c.h.b16 %v18
  %v93 = vunpack.c.l.b16 %v19
  %v94 = vunpack.c.h.b16 %v19
  %v95 = vunpack.c.l.b16 %v20
  %v96 = vunpack.c.h.b16 %v20
  %v97 = vunpack.c.l.b16 %v21
  %v98 = vunpack.c.h.b16 %v21
  %v99 = vunpack.c.l.b16 %v22
  %v100 = vunpack.c.h.b16 %v22
  %v101 = vunpack.c.l.b16 %v23
  %v102 = vunpack.c.h.b16 %v23
  %v103 = vunpack.c.l.b16 %v24
  %v104 = vunpack.c.h.b16 %v24
  %v105 = vunpack.c.l.b16 %v25
  %v106 = vunpack.c.h.b16 %v25
  %v107 = vunpack.c.l.b16 %v26
  %v108 = vunpack.c.h.b16 %v26
  %v109 = vunpack.c.l.b16 %v27
  %v110 = vunpack.c.h.b16 %v27
  %v111 = vunpack.c.l.b16 %v28
  %v112 = vunpack.c.h.b16 %v28
  %v113 = vunpack.c.l.b16 %v29
  %v114 = vunpack.c.h.b16 %v29
  %v115 = vunpack.c.l.b16 %v30
  %v116 = vunpack.c.h.b16 %v30
  %v117 = vunpack.c.l.b16 %v31
  %v118 = vunpack.c.h.b16 %v31
  %v119 = vunpack.c.l.b16 %v32
  %v120 = vunpack.c.h.b16 %v32
  %v121 = vunpack.c.l.b16 %v33
  %v122 = vunpack.c.h.b16 %v33
  %v123 = vunpack.c.l.b16 %v34
  %v124 = vunpack.c.h.b16 %v34
  %v125 = vunpack.c.l.b16 %v35
  %v126 = vunpack.c.h.b16 %v35
  %v127 = vunpack.c.l.b16 %v36
  %v128 = vunpack.c.h.b16 %v36
  %v129 = vunpack.c.l.b16 %v37
  %v130 = vunpack.c.h.b16 %v37
  %v131 = vunpack.c.l.b16 %v38
  %v132 = vunpack.c.h.b16 %v38
  %v133 = vunpack.c.l.b16 %v39
  %v134 = vunpack.c.h.b16 %v39
  %v135 = vunpack.c.l.b16 %v40
  %v136 = vunpack.c.h.b16 %v40
  %v137 = vunpack.c.l.b16 %v41
  %v138 = vunpack.c.h.b16 %v41
  %v139 = vunpack.c.l.b16 %v42
  %v140 = vunpack.c.h.b16 %v42
  %v141 = vunpack.c.l.b16 %v43
  %v142 = vunpack.c.h.b16 %v43
  %v143 = vunpack.c.l.b16 %v44
  %v144 = vunpack.c.h.b16 %v44
  %v145 = vunpack.c.l.b16 %v45
  %v146 = vunpack.c.h.b16 %v45
  %v147 = vunpack.c.l.b16 %v46
  %v148 = vunpack.c.h.b16 %v46
  %v149 = vunpack.c.l.b16 %v47
  %v150 = vunpack.c.h.b16 %v47
  %v151 = vunpack.c.l.b16 %v48
  %v152 = vunpack.c.h.b16 %v48
  %v153 = vunpack.c.l.b16 %v49
  %v154 = vunpack.c.h.b16 %v49
  %v155 = vpack.c.b16 %v95, %v91
  %v156 = vpack.c.b16 %v96, %v92
  %v157 = vpack.c.b16 %v97, %v93
  %v158 = vpack.c.b16 %v98, %v94
  %v159 = vpack.c.b16 %v103, %v99
  %v160 = vpack.c.b16 %v104, %v100
  %v161 = vpack.c.b16 %v105, %v101
  %v162 = vpack.c.b16 %v106, %v102
  %v163 = vpack.c.b16 %v111, %v107
  %v164 = vpack.c.b16 %v112, %v108
  %v165 = vpack.c.b16 %v113, %v109
  %v166 = vpack.c.b16 %v114, %v110
  %v167 = vpack.c.b16 %v119, %v115
  %v168 = vpack.c.b16 %v120, %v116
  %v169 = vpack.c.b16 %v121, %v117
  %v170 = vpack.c.b16 %v122, %v118
  %v171 = vpack.c.b16 %v127, %v123
  %v172 = vpack.c.b16 %v128, %v124
  %v173 = vpack.c.b16 %v129, %v125
  %v174 = vpack.c.b16 %v130, %v126
  %v175 = vpack.c.b16 %v135, %v131
  %v176 = vpack.c.b16 %v136, %v132
  %v177 = vpack.c.b16 %v137, %v133
  %v178 = vpack.c.b16 %v138, %v134
  %v179 = vpack.c.b16 %v143, %v139
  %v180 = vpack.c.b16 %v144, %v140
  %v181 = vpack.c.b16 %v145, %v141
  %v182 = vpack.c.b16 %v146, %v142
  %v183 = vpack.c.b16 %v151, %v147
  %v184 = vpack.c.b16 %v152, %v148
  %v185 = vpack.c.b16 %v153, %v149
  %v186 = vpack.c.b16 %v154, %v150
  %219 = vmatprep.subr.bf16.mxu0 %v156
  %220 = vmatpush1.bf16.msra.mxu0 %v155
  %221 = vmatprep.subr.bf16.mxu0 %v160
  %222 = vmatpush1.bf16.msra.mxu0 %v159
  %223 = vmatprep.subr.bf16.mxu0 %v164
  %224 = vmatpush1.bf16.msra.mxu0 %v163
  %225 = vmatprep.subr.bf16.mxu0 %v168
  %226 = vmatpush1.bf16.msra.mxu0 %v167
  %227 = vmatprep.subr.bf16.mxu0 %v172
  %228 = vmatpush1.bf16.msra.mxu0 %v171
  %229 = vmatprep.subr.bf16.mxu0 %v176
  %230 = vmatpush1.bf16.msra.mxu0 %v175
  %231 = vmatprep.subr.bf16.mxu0 %v180
  %232 = vmatpush1.bf16.msra.mxu0 %v179
  %233 = vmatprep.subr.bf16.mxu0 %v184
  %234 = vmatpush1.bf16.msra.mxu0 %v183
  %235 = vmatprep.subr.bf16.mxu0 0
  %236 = vmatpush1.bf16.msra.mxu0 0
  %237 = vmatprep.subr.bf16.mxu0 0
  %238 = vmatpush1.bf16.msra.mxu0 0
  %239 = vmatprep.subr.bf16.mxu0 0
  %240 = vmatpush1.bf16.msra.mxu0 0
  %241 = vmatprep.subr.bf16.mxu0 0
  %242 = vmatpush1.bf16.msra.mxu0 0
  %243 = vmatprep.subr.bf16.mxu0 0
  %244 = vmatpush1.bf16.msra.mxu0 0
  %245 = vmatprep.subr.bf16.mxu0 0
  %246 = vmatpush1.bf16.msra.mxu0 0
  %247 = vmatprep.subr.bf16.mxu0 0
  %248 = vmatpush1.bf16.msra.mxu0 0
  %249 = vmatprep.subr.bf16.mxu0 0
  %250 = vmatpush1.bf16.msra.mxu0 0
  %251 = vmatprep.mubr.bf16.mxu0 0
  %252 = vmatmul.mubr.bf16.gmra.mrb[0].mxu0 %v58
  %v253 = vpop.f32.mrb[0].mxu0
  %v254 = vadd.f32 0.0, %v253
  %v255 = vpop.f32.mrb[0].mxu0
  %v256 = vadd.f32 0.0, %v255
  %v257 = vpop.f32.mrb[0].mxu0
  %v258 = vpop.f32.mrb[0].mxu0
  %259 = vdwg.mxu0
  %260 = vmatprep.subr.bf16.mxu0 %v158
  %261 = vmatpush1.bf16.msra.mxu0 %v157
  %262 = vmatprep.subr.bf16.mxu0 %v162
  %263 = vmatpush1.bf16.msra.mxu0 %v161
  %264 = vmatprep.subr.bf16.mxu0 %v166
  %265 = vmatpush1.bf16.msra.mxu0 %v165
  %266 = vmatprep.subr.bf16.mxu0 %v170
  %267 = vmatpush1.bf16.msra.mxu0 %v169
  %268 = vmatprep.subr.bf16.mxu0 %v174
  %269 = vmatpush1.bf16.msra.mxu0 %v173
  %270 = vmatprep.subr.bf16.mxu0 %v178
  %271 = vmatpush1.bf16.msra.mxu0 %v177
  %272 = vmatprep.subr.bf16.mxu0 %v182
  %273 = vmatpush1.bf16.msra.mxu0 %v181
  %274 = vmatprep.subr.bf16.mxu0 %v186
  %275 = vmatpush1.bf16.msra.mxu0 %v185
  %276 = vmatprep.subr.bf16.mxu0 0
  %277 = vmatpush1.bf16.msra.mxu0 0
  %278 = vmatprep.subr.bf16.mxu0 0
  %279 = vmatpush1.bf16.msra.mxu0 0
  %280 = vmatprep.subr.bf16.mxu0 0
  %281 = vmatpush1.bf16.msra.mxu0 0
  %282 = vmatprep.subr.bf16.mxu0 0
  %283 = vmatpush1.bf16.msra.mxu0 0
  %284 = vmatprep.subr.bf16.mxu0 0
  %285 = vmatpush1.bf16.msra.mxu0 0
  %286 = vmatprep.subr.bf16.mxu0 0
  %287 = vmatpush1.bf16.msra.mxu0 0
  %288 = vmatprep.subr.bf16.mxu0 0
  %289 = vmatpush1.bf16.msra.mxu0 0
  %290 = vmatprep.subr.bf16.mxu0 0
  %291 = vmatpush1.bf16.msra.mxu0 0
  %292 = vmatprep.mubr.bf16.mxu0 0
  %293 = vmatmul.mubr.bf16.gmra.mrb[0].mxu0 %v58
  %v294 = vpop.f32.mrb[0].mxu0
  %v295 = vadd.f32 0.0, %v294
  %v296 = vpop.f32.mrb[0].mxu0
  %v297 = vadd.f32 0.0, %v296
  %v298 = vpop.f32.mrb[0].mxu0
  %v299 = vpop.f32.mrb[0].mxu0
  %300 = vdwg.mxu0
  %v301 = vadd.f32 %v54, %v254
  %v302 = vadd.f32 %v55, %v256
  %v303 = vadd.f32 %v56, %v295
  %v304 = vadd.f32 %v57, %v297
  %v305 = vxor.u32 %v301, 2147483648
  %v306 = vxor.u32 %v302, 2147483648
  %v307 = vxor.u32 %v303, 2147483648
  %v308 = vmul.f32 %v305, 1.442695
  %v309 = vpow.pop %v308
  %v310 = vmul.f32 %v306, 1.442695
  %v311 = vpow.pop %v310
  %v312 = vmul.f32 %v307, 1.442695
  %v313 = vpow.pop %v312
  %v314 = vadd.f32 %v309, 1.0
  %v315 = vadd.f32 %v311, 1.0
  %v316 = vadd.f32 %v313, 1.0
  %v317 = vrcp.pop %v314
  %v318 = vmul.f32 1.0, %v317
  %v319 = vrcp.pop %v315
  %v320 = vmul.f32 1.0, %v319
  %v321 = vrcp.pop %v316
  %v322 = vmul.f32 1.0, %v321
  %v323 = vtanh.pop %v304
  %v324 = vmul.f32 %v320, %v51
  %v325 = vmul.f32 %v318, %v323
  %v326 = vadd.f32 %v324, %v325
  %v327 = vtanh.pop %v326
  %v328 = vmul.f32 %v322, %v327
  %v330 = vcombine.high %v328, %v328
  %v332 = vunpack.c.l.s4 1966171168
  %v333 = vunpack.c.0.s8 %v332
  %v334 = vlaneseq
  %v335 = vshrl.u32 %v334, 7
  %v336 = vsub.s32 %v333, %v335
  %v337 = vrot.slane %v328, %v336
  %v339 = vunpack.c.l.s4 1966171168
  %v340 = vunpack.c.0.s8 %v339
  %v341 = vlaneseq
  %v342 = vshrl.u32 %v341, 7
  %v343 = vsub.s32 %v340, %v342
  %v344 = vrot.slane %v330, %v343
  %v345 = vcombine.high %v337, %v337
  %v346 = vcombine.high %v344, %v344
  %v348 = vunpack.c.l.s4 1966171168
  %v349 = vunpack.c.0.s8 %v348
  %v350 = vlaneseq
  %v351 = vshrl.u32 %v350, 7
  %v352 = vsub.s32 %v349, %v351
  %v353 = vrot.slane %v337, %v352
  %v355 = vunpack.c.l.s4 1966171168
  %v356 = vunpack.c.0.s8 %v355
  %v357 = vlaneseq
  %v358 = vshrl.u32 %v357, 7
  %v359 = vsub.s32 %v356, %v358
  %v360 = vrot.slane %v344, %v359
  %v362 = vunpack.c.l.s4 1966171168
  %v363 = vunpack.c.0.s8 %v362
  %v364 = vlaneseq
  %v365 = vshrl.u32 %v364, 7
  %v366 = vsub.s32 %v363, %v365
  %v367 = vrot.slane %v345, %v366
  %v369 = vunpack.c.l.s4 1966171168
  %v370 = vunpack.c.0.s8 %v369
  %v371 = vlaneseq
  %v372 = vshrl.u32 %v371, 7
  %v373 = vsub.s32 %v370, %v372
  %v374 = vrot.slane %v346, %v373
  %v375 = vcombine.high %v353, %v353
  %v376 = vcombine.high %v360, %v360
  %v377 = vcombine.high %v367, %v367
  %v378 = vcombine.high %v374, %v374
  %387 = vst [vmem:[%s2] sm:$0x1] %v353
  %388 = vst [vmem:[%s2 + $0x8] sm:$0x1] %v367
  %389 = vst [vmem:[%s2 + $0x10] sm:$0x1] %v375
  %390 = vst [vmem:[%s2 + $0x18] sm:$0x1] %v377
  %391 = vst [vmem:[%s2 + $0x20] sm:$0x1] %v360
  %392 = vst [vmem:[%s2 + $0x28] sm:$0x1] %v374
  %393 = vst [vmem:[%s2 + $0x30] sm:$0x1] %v376
  %394 = vst [vmem:[%s2 + $0x38] sm:$0x1] %v378
  %s395 = scalar_lea.vmem %s0, 16
  %v396 = vld [vmem:[%s395] sm:$0xff]
  %v397 = vld [vmem:[%s395 + $0x8] sm:$0xff]
  %v398 = vunpack.c.l.bf16 %v396
  %v399 = vunpack.c.h.bf16 %v396
  %v400 = vunpack.c.l.bf16 %v397
  %v401 = vunpack.c.h.bf16 %v397
  %v402 = vpack.c.bf16 %v328, %v328
  %403 = vmatprep.subr.bf16.mxu0 %v156
  %404 = vmatpush1.bf16.msra.mxu0 %v155
  %405 = vmatprep.subr.bf16.mxu0 %v160
  %406 = vmatpush1.bf16.msra.mxu0 %v159
  %407 = vmatprep.subr.bf16.mxu0 %v164
  %408 = vmatpush1.bf16.msra.mxu0 %v163
  %409 = vmatprep.subr.bf16.mxu0 %v168
  %410 = vmatpush1.bf16.msra.mxu0 %v167
  %411 = vmatprep.subr.bf16.mxu0 %v172
  %412 = vmatpush1.bf16.msra.mxu0 %v171
  %413 = vmatprep.subr.bf16.mxu0 %v176
  %414 = vmatpush1.bf16.msra.mxu0 %v175
  %415 = vmatprep.subr.bf16.mxu0 %v180
  %416 = vmatpush1.bf16.msra.mxu0 %v179
  %417 = vmatprep.subr.bf16.mxu0 %v184
  %418 = vmatpush1.bf16.msra.mxu0 %v183
  %419 = vmatprep.subr.bf16.mxu0 0
  %420 = vmatpush1.bf16.msra.mxu0 0
  %421 = vmatprep.subr.bf16.mxu0 0
  %422 = vmatpush1.bf16.msra.mxu0 0
  %423 = vmatprep.subr.bf16.mxu0 0
  %424 = vmatpush1.bf16.msra.mxu0 0
  %425 = vmatprep.subr.bf16.mxu0 0
  %426 = vmatpush1.bf16.msra.mxu0 0
  %427 = vmatprep.subr.bf16.mxu0 0
  %428 = vmatpush1.bf16.msra.mxu0 0
  %429 = vmatprep.subr.bf16.mxu0 0
  %430 = vmatpush1.bf16.msra.mxu0 0
  %431 = vmatprep.subr.bf16.mxu0 0
  %432 = vmatpush1.bf16.msra.mxu0 0
  %433 = vmatprep.subr.bf16.mxu0 0
  %434 = vmatpush1.bf16.msra.mxu0 0
  %435 = vmatprep.mubr.bf16.mxu0 0
  %436 = vmatmul.mubr.bf16.gmra.mrb[0].mxu0 %v402
  %v437 = vpop.f32.mrb[0].mxu0
  %v438 = vadd.f32 0.0, %v437
  %v439 = vpop.f32.mrb[0].mxu0
  %v440 = vadd.f32 0.0, %v439
  %v441 = vpop.f32.mrb[0].mxu0
  %v442 = vpop.f32.mrb[0].mxu0
  %443 = vdwg.mxu0
  %444 = vmatprep.subr.bf16.mxu0 %v158
  %445 = vmatpush1.bf16.msra.mxu0 %v157
  %446 = vmatprep.subr.bf16.mxu0 %v162
  %447 = vmatpush1.bf16.msra.mxu0 %v161
  %448 = vmatprep.subr.bf16.mxu0 %v166
  %449 = vmatpush1.bf16.msra.mxu0 %v165
  %450 = vmatprep.subr.bf16.mxu0 %v170
  %451 = vmatpush1.bf16.msra.mxu0 %v169
  %452 = vmatprep.subr.bf16.mxu0 %v174
  %453 = vmatpush1.bf16.msra.mxu0 %v173
  %454 = vmatprep.subr.bf16.mxu0 %v178
  %455 = vmatpush1.bf16.msra.mxu0 %v177
  %456 = vmatprep.subr.bf16.mxu0 %v182
  %457 = vmatpush1.bf16.msra.mxu0 %v181
  %458 = vmatprep.subr.bf16.mxu0 %v186
  %459 = vmatpush1.bf16.msra.mxu0 %v185
  %460 = vmatprep.subr.bf16.mxu0 0
  %461 = vmatpush1.bf16.msra.mxu0 0
  %462 = vmatprep.subr.bf16.mxu0 0
  %463 = vmatpush1.bf16.msra.mxu0 0
  %464 = vmatprep.subr.bf16.mxu0 0
  %465 = vmatpush1.bf16.msra.mxu0 0
  %466 = vmatprep.subr.bf16.mxu0 0
  %467 = vmatpush1.bf16.msra.mxu0 0
  %468 = vmatprep.subr.bf16.mxu0 0
  %469 = vmatpush1.bf16.msra.mxu0 0
  %470 = vmatprep.subr.bf16.mxu0 0
  %471 = vmatpush1.bf16.msra.mxu0 0
  %472 = vmatprep.subr.bf16.mxu0 0
  %473 = vmatpush1.bf16.msra.mxu0 0
  %474 = vmatprep.subr.bf16.mxu0 0
  %475 = vmatpush1.bf16.msra.mxu0 0
  %476 = vmatprep.mubr.bf16.mxu0 0
  %477 = vmatmul.mubr.bf16.gmra.mrb[0].mxu0 %v402
  %v478 = vpop.f32.mrb[0].mxu0
  %v479 = vadd.f32 0.0, %v478
  %v480 = vpop.f32.mrb[0].mxu0
  %v481 = vadd.f32 0.0, %v480
  %v482 = vpop.f32.mrb[0].mxu0
  %v483 = vpop.f32.mrb[0].mxu0
  %484 = vdwg.mxu0
  %v485 = vadd.f32 %v398, %v438
  %v486 = vadd.f32 %v399, %v440
  %v487 = vadd.f32 %v400, %v479
  %v488 = vadd.f32 %v401, %v481
  %v489 = vxor.u32 %v485, 2147483648
  %v490 = vxor.u32 %v486, 2147483648
  %v491 = vxor.u32 %v487, 2147483648
  %v492 = vmul.f32 %v489, 1.442695
  %v493 = vpow.pop %v492
  %v494 = vmul.f32 %v490, 1.442695
  %v495 = vpow.pop %v494
  %v496 = vmul.f32 %v491, 1.442695
  %v497 = vpow.pop %v496
  %v498 = vadd.f32 %v493, 1.0
  %v499 = vadd.f32 %v495, 1.0
  %v500 = vadd.f32 %v497, 1.0
  %v501 = vrcp.pop %v498
  %v502 = vmul.f32 1.0, %v501
  %v503 = vrcp.pop %v499
  %v504 = vmul.f32 1.0, %v503
  %v505 = vrcp.pop %v500
  %v506 = vmul.f32 1.0, %v505
  %v507 = vtanh.pop %v488
  %v508 = vmul.f32 %v504, %v326
  %v509 = vmul.f32 %v502, %v507
  %v510 = vadd.f32 %v508, %v509
  %v511 = vtanh.pop %v510
  %v512 = vmul.f32 %v506, %v511
  %v514 = vcombine.high %v512, %v512
  %v516 = vunpack.c.l.s4 1966171168
  %v517 = vunpack.c.0.s8 %v516
  %v518 = vlaneseq
  %v519 = vshrl.u32 %v518, 7
  %v520 = vsub.s32 %v517, %v519
  %v521 = vrot.slane %v512, %v520
  %v523 = vunpack.c.l.s4 1966171168
  %v524 = vunpack.c.0.s8 %v523
  %v525 = vlaneseq
  %v526 = vshrl.u32 %v525, 7
  %v527 = vsub.s32 %v524, %v526
  %v528 = vrot.slane %v514, %v527
  %v529 = vcombine.high %v521, %v521
  %v530 = vcombine.high %v528, %v528
  %v532 = vunpack.c.l.s4 1966171168
  %v533 = vunpack.c.0.s8 %v532
  %v534 = vlaneseq
  %v535 = vshrl.u32 %v534, 7
  %v536 = vsub.s32 %v533, %v535
  %v537 = vrot.slane %v521, %v536
  %v539 = vunpack.c.l.s4 1966171168
  %v540 = vunpack.c.0.s8 %v539
  %v541 = vlaneseq
  %v542 = vshrl.u32 %v541, 7
  %v543 = vsub.s32 %v540, %v542
  %v544 = vrot.slane %v528, %v543
  %v546 = vunpack.c.l.s4 1966171168
  %v547 = vunpack.c.0.s8 %v546
  %v548 = vlaneseq
  %v549 = vshrl.u32 %v548, 7
  %v550 = vsub.s32 %v547, %v549
  %v551 = vrot.slane %v529, %v550
  %v553 = vunpack.c.l.s4 1966171168
  %v554 = vunpack.c.0.s8 %v553
  %v555 = vlaneseq
  %v556 = vshrl.u32 %v555, 7
  %v557 = vsub.s32 %v554, %v556
  %v558 = vrot.slane %v530, %v557
  %v559 = vcombine.high %v537, %v537
  %v560 = vcombine.high %v544, %v544
  %v561 = vcombine.high %v551, %v551
  %v562 = vcombine.high %v558, %v558
  %571 = vst [vmem:[%s2 + $0x1] sm:$0x1] %v537
  %572 = vst [vmem:[%s2 + $0x9] sm:$0x1] %v551
  %573 = vst [vmem:[%s2 + $0x11] sm:$0x1] %v559
  %574 = vst [vmem:[%s2 + $0x19] sm:$0x1] %v561
  %575 = vst [vmem:[%s2 + $0x21] sm:$0x1] %v544
  %576 = vst [vmem:[%s2 + $0x29] sm:$0x1] %v558
  %577 = vst [vmem:[%s2 + $0x31] sm:$0x1] %v560
  %578 = vst [vmem:[%s2 + $0x39] sm:$0x1] %v562
  %s579 = scalar_lea.vmem %s0, 32
  %v580 = vld [vmem:[%s579] sm:$0xff]
  %v581 = vld [vmem:[%s579 + $0x8] sm:$0xff]
  %v582 = vunpack.c.l.bf16 %v580
  %v583 = vunpack.c.h.bf16 %v580
  %v584 = vunpack.c.l.bf16 %v581
  %v585 = vunpack.c.h.bf16 %v581
  %v586 = vpack.c.bf16 %v512, %v512
  %587 = vmatprep.subr.bf16.mxu0 %v156
  %588 = vmatpush1.bf16.msra.mxu0 %v155
  %589 = vmatprep.subr.bf16.mxu0 %v160
  %590 = vmatpush1.bf16.msra.mxu0 %v159
  %591 = vmatprep.subr.bf16.mxu0 %v164
  %592 = vmatpush1.bf16.msra.mxu0 %v163
  %593 = vmatprep.subr.bf16.mxu0 %v168
  %594 = vmatpush1.bf16.msra.mxu0 %v167
  %595 = vmatprep.subr.bf16.mxu0 %v172
  %596 = vmatpush1.bf16.msra.mxu0 %v171
  %597 = vmatprep.subr.bf16.mxu0 %v176
  %598 = vmatpush1.bf16.msra.mxu0 %v175
  %599 = vmatprep.subr.bf16.mxu0 %v180
  %600 = vmatpush1.bf16.msra.mxu0 %v179
  %601 = vmatprep.subr.bf16.mxu0 %v184
  %602 = vmatpush1.bf16.msra.mxu0 %v183
  %603 = vmatprep.subr.bf16.mxu0 0
  %604 = vmatpush1.bf16.msra.mxu0 0
  %605 = vmatprep.subr.bf16.mxu0 0
  %606 = vmatpush1.bf16.msra.mxu0 0
  %607 = vmatprep.subr.bf16.mxu0 0
  %608 = vmatpush1.bf16.msra.mxu0 0
  %609 = vmatprep.subr.bf16.mxu0 0
  %610 = vmatpush1.bf16.msra.mxu0 0
  %611 = vmatprep.subr.bf16.mxu0 0
  %612 = vmatpush1.bf16.msra.mxu0 0
  %613 = vmatprep.subr.bf16.mxu0 0
  %614 = vmatpush1.bf16.msra.mxu0 0
  %615 = vmatprep.subr.bf16.mxu0 0
  %616 = vmatpush1.bf16.msra.mxu0 0
  %617 = vmatprep.subr.bf16.mxu0 0
  %618 = vmatpush1.bf16.msra.mxu0 0
  %619 = vmatprep.mubr.bf16.mxu0 0
  %620 = vmatmul.mubr.bf16.gmra.mrb[0].mxu0 %v586
  %v621 = vpop.f32.mrb[0].mxu0
  %v622 = vadd.f32 0.0, %v621
  %v623 = vpop.f32.mrb[0].mxu0
  %v624 = vadd.f32 0.0, %v623
  %v625 = vpop.f32.mrb[0].mxu0
  %v626 = vpop.f32.mrb[0].mxu0
  %627 = vdwg.mxu0
  %628 = vmatprep.subr.bf16.mxu0 %v158
  %629 = vmatpush1.bf16.msra.mxu0 %v157
  %630 = vmatprep.subr.bf16.mxu0 %v162
  %631 = vmatpush1.bf16.msra.mxu0 %v161
  %632 = vmatprep.subr.bf16.mxu0 %v166
  %633 = vmatpush1.bf16.msra.mxu0 %v165
  %634 = vmatprep.subr.bf16.mxu0 %v170
  %635 = vmatpush1.bf16.msra.mxu0 %v169
  %636 = vmatprep.subr.bf16.mxu0 %v174
  %637 = vmatpush1.bf16.msra.mxu0 %v173
  %638 = vmatprep.subr.bf16.mxu0 %v178
  %639 = vmatpush1.bf16.msra.mxu0 %v177
  %640 = vmatprep.subr.bf16.mxu0 %v182
  %641 = vmatpush1.bf16.msra.mxu0 %v181
  %642 = vmatprep.subr.bf16.mxu0 %v186
  %643 = vmatpush1.bf16.msra.mxu0 %v185
  %644 = vmatprep.subr.bf16.mxu0 0
  %645 = vmatpush1.bf16.msra.mxu0 0
  %646 = vmatprep.subr.bf16.mxu0 0
  %647 = vmatpush1.bf16.msra.mxu0 0
  %648 = vmatprep.subr.bf16.mxu0 0
  %649 = vmatpush1.bf16.msra.mxu0 0
  %650 = vmatprep.subr.bf16.mxu0 0
  %651 = vmatpush1.bf16.msra.mxu0 0
  %652 = vmatprep.subr.bf16.mxu0 0
  %653 = vmatpush1.bf16.msra.mxu0 0
  %654 = vmatprep.subr.bf16.mxu0 0
  %655 = vmatpush1.bf16.msra.mxu0 0
  %656 = vmatprep.subr.bf16.mxu0 0
  %657 = vmatpush1.bf16.msra.mxu0 0
  %658 = vmatprep.subr.bf16.mxu0 0
  %659 = vmatpush1.bf16.msra.mxu0 0
  %660 = vmatprep.mubr.bf16.mxu0 0
  %661 = vmatmul.mubr.bf16.gmra.mrb[0].mxu0 %v586
  %v662 = vpop.f32.mrb[0].mxu0
  %v663 = vadd.f32 0.0, %v662
  %v664 = vpop.f32.mrb[0].mxu0
  %v665 = vadd.f32 0.0, %v664
  %v666 = vpop.f32.mrb[0].mxu0
  %v667 = vpop.f32.mrb[0].mxu0
  %668 = vdwg.mxu0
  %v669 = vadd.f32 %v582, %v622
  %v670 = vadd.f32 %v583, %v624
  %v671 = vadd.f32 %v584, %v663
  %v672 = vadd.f32 %v585, %v665
  %v673 = vxor.u32 %v669, 2147483648
  %v674 = vxor.u32 %v670, 2147483648
  %v675 = vxor.u32 %v671, 2147483648
  %v676 = vmul.f32 %v673, 1.442695
  %v677 = vpow.pop %v676
  %v678 = vmul.f32 %v674, 1.442695
  %v679 = vpow.pop %v678
  %v680 = vmul.f32 %v675, 1.442695
  %v681 = vpow.pop %v680
  %v682 = vadd.f32 %v677, 1.0
  %v683 = vadd.f32 %v679, 1.0
  %v684 = vadd.f32 %v681, 1.0
  %v685 = vrcp.pop %v682
  %v686 = vmul.f32 1.0, %v685
  %v687 = vrcp.pop %v683
  %v688 = vmul.f32 1.0, %v687
  %v689 = vrcp.pop %v684
  %v690 = vmul.f32 1.0, %v689
  %v691 = vtanh.pop %v672
  %v692 = vmul.f32 %v688, %v510
  %v693 = vmul.f32 %v686, %v691
  %v694 = vadd.f32 %v692, %v693
  %v695 = vtanh.pop %v694
  %v696 = vmul.f32 %v690, %v695
  %v698 = vcombine.high %v696, %v696
  %v700 = vunpack.c.l.s4 1966171168
  %v701 = vunpack.c.0.s8 %v700
  %v702 = vlaneseq
  %v703 = vshrl.u32 %v702, 7
  %v704 = vsub.s32 %v701, %v703
  %v705 = vrot.slane %v696, %v704
  %v707 = vunpack.c.l.s4 1966171168
  %v708 = vunpack.c.0.s8 %v707
  %v709 = vlaneseq
  %v710 = vshrl.u32 %v709, 7
  %v711 = vsub.s32 %v708, %v710
  %v712 = vrot.slane %v698, %v711
  %v713 = vcombine.high %v705, %v705
  %v714 = vcombine.high %v712, %v712
  %v716 = vunpack.c.l.s4 1966171168
  %v717 = vunpack.c.0.s8 %v716
  %v718 = vlaneseq
  %v719 = vshrl.u32 %v718, 7
  %v720 = vsub.s32 %v717, %v719
  %v721 = vrot.slane %v705, %v720
  %v723 = vunpack.c.l.s4 1966171168
  %v724 = vunpack.c.0.s8 %v723
  %v725 = vlaneseq
  %v726 = vshrl.u32 %v725, 7
  %v727 = vsub.s32 %v724, %v726
  %v728 = vrot.slane %v712, %v727
  %v730 = vunpack.c.l.s4 1966171168
  %v731 = vunpack.c.0.s8 %v730
  %v732 = vlaneseq
  %v733 = vshrl.u32 %v732, 7
  %v734 = vsub.s32 %v731, %v733
  %v735 = vrot.slane %v713, %v734
  %v737 = vunpack.c.l.s4 1966171168
  %v738 = vunpack.c.0.s8 %v737
  %v739 = vlaneseq
  %v740 = vshrl.u32 %v739, 7
  %v741 = vsub.s32 %v738, %v740
  %v742 = vrot.slane %v714, %v741
  %v743 = vcombine.high %v721, %v721
  %v744 = vcombine.high %v728, %v728
  %v745 = vcombine.high %v735, %v735
  %v746 = vcombine.high %v742, %v742
  %755 = vst [vmem:[%s2 + $0x2] sm:$0x1] %v721
  %756 = vst [vmem:[%s2 + $0xa] sm:$0x1] %v735
  %757 = vst [vmem:[%s2 + $0x12] sm:$0x1] %v743
  %758 = vst [vmem:[%s2 + $0x1a] sm:$0x1] %v745
  %759 = vst [vmem:[%s2 + $0x22] sm:$0x1] %v728
  %760 = vst [vmem:[%s2 + $0x2a] sm:$0x1] %v742
  %761 = vst [vmem:[%s2 + $0x32] sm:$0x1] %v744
  %762 = vst [vmem:[%s2 + $0x3a] sm:$0x1] %v746
  %s763 = scalar_lea.vmem %s0, 48
  %v764 = vld [vmem:[%s763] sm:$0xff]
  %v765 = vld [vmem:[%s763 + $0x8] sm:$0xff]
  %v766 = vunpack.c.l.bf16 %v764
  %v767 = vunpack.c.h.bf16 %v764
  %v768 = vunpack.c.l.bf16 %v765
  %v769 = vunpack.c.h.bf16 %v765
  %v770 = vpack.c.bf16 %v696, %v696
  %771 = vmatprep.subr.bf16.mxu0 %v156
  %772 = vmatpush1.bf16.msra.mxu0 %v155
  %773 = vmatprep.subr.bf16.mxu0 %v160
  %774 = vmatpush1.bf16.msra.mxu0 %v159
  %775 = vmatprep.subr.bf16.mxu0 %v164
  %776 = vmatpush1.bf16.msra.mxu0 %v163
  %777 = vmatprep.subr.bf16.mxu0 %v168
  %778 = vmatpush1.bf16.msra.mxu0 %v167
  %779 = vmatprep.subr.bf16.mxu0 %v172
  %780 = vmatpush1.bf16.msra.mxu0 %v171
  %781 = vmatprep.subr.bf16.mxu0 %v176
  %782 = vmatpush1.bf16.msra.mxu0 %v175
  %783 = vmatprep.subr.bf16.mxu0 %v180
  %784 = vmatpush1.bf16.msra.mxu0 %v179
  %785 = vmatprep.subr.bf16.mxu0 %v184
  %786 = vmatpush1.bf16.msra.mxu0 %v183
  %787 = vmatprep.subr.bf16.mxu0 0
  %788 = vmatpush1.bf16.msra.mxu0 0
  %789 = vmatprep.subr.bf16.mxu0 0
  %790 = vmatpush1.bf16.msra.mxu0 0
  %791 = vmatprep.subr.bf16.mxu0 0
  %792 = vmatpush1.bf16.msra.mxu0 0
  %793 = vmatprep.subr.bf16.mxu0 0
  %794 = vmatpush1.bf16.msra.mxu0 0
  %795 = vmatprep.subr.bf16.mxu0 0
  %796 = vmatpush1.bf16.msra.mxu0 0
  %797 = vmatprep.subr.bf16.mxu0 0
  %798 = vmatpush1.bf16.msra.mxu0 0
  %799 = vmatprep.subr.bf16.mxu0 0
  %800 = vmatpush1.bf16.msra.mxu0 0
  %801 = vmatprep.subr.bf16.mxu0 0
  %802 = vmatpush1.bf16.msra.mxu0 0
  %803 = vmatprep.mubr.bf16.mxu0 0
  %804 = vmatmul.mubr.bf16.gmra.mrb[0].mxu0 %v770
  %v805 = vpop.f32.mrb[0].mxu0
  %v806 = vadd.f32 0.0, %v805
  %v807 = vpop.f32.mrb[0].mxu0
  %v808 = vadd.f32 0.0, %v807
  %v809 = vpop.f32.mrb[0].mxu0
  %v810 = vpop.f32.mrb[0].mxu0
  %811 = vdwg.mxu0
  %812 = vmatprep.subr.bf16.mxu0 %v158
  %813 = vmatpush1.bf16.msra.mxu0 %v157
  %814 = vmatprep.subr.bf16.mxu0 %v162
  %815 = vmatpush1.bf16.msra.mxu0 %v161
  %816 = vmatprep.subr.bf16.mxu0 %v166
  %817 = vmatpush1.bf16.msra.mxu0 %v165
  %818 = vmatprep.subr.bf16.mxu0 %v170
  %819 = vmatpush1.bf16.msra.mxu0 %v169
  %820 = vmatprep.subr.bf16.mxu0 %v174
  %821 = vmatpush1.bf16.msra.mxu0 %v173
  %822 = vmatprep.subr.bf16.mxu0 %v178
  %823 = vmatpush1.bf16.msra.mxu0 %v177
  %824 = vmatprep.subr.bf16.mxu0 %v182
  %825 = vmatpush1.bf16.msra.mxu0 %v181
  %826 = vmatprep.subr.bf16.mxu0 %v186
  %827 = vmatpush1.bf16.msra.mxu0 %v185
  %828 = vmatprep.subr.bf16.mxu0 0
  %829 = vmatpush1.bf16.msra.mxu0 0
  %830 = vmatprep.subr.bf16.mxu0 0
  %831 = vmatpush1.bf16.msra.mxu0 0
  %832 = vmatprep.subr.bf16.mxu0 0
  %833 = vmatpush1.bf16.msra.mxu0 0
  %834 = vmatprep.subr.bf16.mxu0 0
  %835 = vmatpush1.bf16.msra.mxu0 0
  %836 = vmatprep.subr.bf16.mxu0 0
  %837 = vmatpush1.bf16.msra.mxu0 0
  %838 = vmatprep.subr.bf16.mxu0 0
  %839 = vmatpush1.bf16.msra.mxu0 0
  %840 = vmatprep.subr.bf16.mxu0 0
  %841 = vmatpush1.bf16.msra.mxu0 0
  %842 = vmatprep.subr.bf16.mxu0 0
  %843 = vmatpush1.bf16.msra.mxu0 0
  %844 = vmatprep.mubr.bf16.mxu0 0
  %845 = vmatmul.mubr.bf16.gmra.mrb[0].mxu0 %v770
  %v846 = vpop.f32.mrb[0].mxu0
  %v847 = vadd.f32 0.0, %v846
  %v848 = vpop.f32.mrb[0].mxu0
  %v849 = vadd.f32 0.0, %v848
  %v850 = vpop.f32.mrb[0].mxu0
  %v851 = vpop.f32.mrb[0].mxu0
  %852 = vdwg.mxu0
  %v853 = vadd.f32 %v766, %v806
  %v854 = vadd.f32 %v767, %v808
  %v855 = vadd.f32 %v768, %v847
  %v856 = vadd.f32 %v769, %v849
  %v857 = vxor.u32 %v853, 2147483648
  %v858 = vxor.u32 %v854, 2147483648
  %v859 = vxor.u32 %v855, 2147483648
  %v860 = vmul.f32 %v857, 1.442695
  %v861 = vpow.pop %v860
  %v862 = vmul.f32 %v858, 1.442695
  %v863 = vpow.pop %v862
  %v864 = vmul.f32 %v859, 1.442695
  %v865 = vpow.pop %v864
  %v866 = vadd.f32 %v861, 1.0
  %v867 = vadd.f32 %v863, 1.0
  %v868 = vadd.f32 %v865, 1.0
  %v869 = vrcp.pop %v866
  %v870 = vmul.f32 1.0, %v869
  %v871 = vrcp.pop %v867
  %v872 = vmul.f32 1.0, %v871
  %v873 = vrcp.pop %v868
  %v874 = vmul.f32 1.0, %v873
  %v875 = vtanh.pop %v856
  %v876 = vmul.f32 %v872, %v694
  %v877 = vmul.f32 %v870, %v875
  %v878 = vadd.f32 %v876, %v877
  %v879 = vtanh.pop %v878
  %v880 = vmul.f32 %v874, %v879
  %v882 = vcombine.high %v880, %v880
  %v884 = vunpack.c.l.s4 1966171168
  %v885 = vunpack.c.0.s8 %v884
  %v886 = vlaneseq
  %v887 = vshrl.u32 %v886, 7
  %v888 = vsub.s32 %v885, %v887
  %v889 = vrot.slane %v880, %v888
  %v891 = vunpack.c.l.s4 1966171168
  %v892 = vunpack.c.0.s8 %v891
  %v893 = vlaneseq
  %v894 = vshrl.u32 %v893, 7
  %v895 = vsub.s32 %v892, %v894
  %v896 = vrot.slane %v882, %v895
  %v897 = vcombine.high %v889, %v889
  %v898 = vcombine.high %v896, %v896
  %v900 = vunpack.c.l.s4 1966171168
  %v901 = vunpack.c.0.s8 %v900
  %v902 = vlaneseq
  %v903 = vshrl.u32 %v902, 7
  %v904 = vsub.s32 %v901, %v903
  %v905 = vrot.slane %v889, %v904
  %v907 = vunpack.c.l.s4 1966171168
  %v908 = vunpack.c.0.s8 %v907
  %v909 = vlaneseq
  %v910 = vshrl.u32 %v909, 7
  %v911 = vsub.s32 %v908, %v910
  %v912 = vrot.slane %v896, %v911
  %v914 = vunpack.c.l.s4 1966171168
  %v915 = vunpack.c.0.s8 %v914
  %v916 = vlaneseq
  %v917 = vshrl.u32 %v916, 7
  %v918 = vsub.s32 %v915, %v917
  %v919 = vrot.slane %v897, %v918
  %v921 = vunpack.c.l.s4 1966171168
  %v922 = vunpack.c.0.s8 %v921
  %v923 = vlaneseq
  %v924 = vshrl.u32 %v923, 7
  %v925 = vsub.s32 %v922, %v924
  %v926 = vrot.slane %v898, %v925
  %v927 = vcombine.high %v905, %v905
  %v928 = vcombine.high %v912, %v912
  %v929 = vcombine.high %v919, %v919
  %v930 = vcombine.high %v926, %v926
  %939 = vst [vmem:[%s2 + $0x3] sm:$0x1] %v905
  %940 = vst [vmem:[%s2 + $0xb] sm:$0x1] %v919
  %941 = vst [vmem:[%s2 + $0x13] sm:$0x1] %v927
  %942 = vst [vmem:[%s2 + $0x1b] sm:$0x1] %v929
  %943 = vst [vmem:[%s2 + $0x23] sm:$0x1] %v912
  %944 = vst [vmem:[%s2 + $0x2b] sm:$0x1] %v926
  %945 = vst [vmem:[%s2 + $0x33] sm:$0x1] %v928
  %946 = vst [vmem:[%s2 + $0x3b] sm:$0x1] %v930
  %s947 = scalar_lea.vmem %s0, 64
  %v948 = vld [vmem:[%s947] sm:$0xff]
  %v949 = vld [vmem:[%s947 + $0x8] sm:$0xff]
  %v950 = vunpack.c.l.bf16 %v948
  %v951 = vunpack.c.h.bf16 %v948
  %v952 = vunpack.c.l.bf16 %v949
  %v953 = vunpack.c.h.bf16 %v949
  %v954 = vpack.c.bf16 %v880, %v880
  %955 = vmatprep.subr.bf16.mxu0 %v156
  %956 = vmatpush1.bf16.msra.mxu0 %v155
  %957 = vmatprep.subr.bf16.mxu0 %v160
  %958 = vmatpush1.bf16.msra.mxu0 %v159
  %959 = vmatprep.subr.bf16.mxu0 %v164
  %960 = vmatpush1.bf16.msra.mxu0 %v163
  %961 = vmatprep.subr.bf16.mxu0 %v168
  %962 = vmatpush1.bf16.msra.mxu0 %v167
  %963 = vmatprep.subr.bf16.mxu0 %v172
  %964 = vmatpush1.bf16.msra.mxu0 %v171
  %965 = vmatprep.subr.bf16.mxu0 %v176
  %966 = vmatpush1.bf16.msra.mxu0 %v175
  %967 = vmatprep.subr.bf16.mxu0 %v180
  %968 = vmatpush1.bf16.msra.mxu0 %v179
  %969 = vmatprep.subr.bf16.mxu0 %v184
  %970 = vmatpush1.bf16.msra.mxu0 %v183
  %971 = vmatprep.subr.bf16.mxu0 0
  %972 = vmatpush1.bf16.msra.mxu0 0
  %973 = vmatprep.subr.bf16.mxu0 0
  %974 = vmatpush1.bf16.msra.mxu0 0
  %975 = vmatprep.subr.bf16.mxu0 0
  %976 = vmatpush1.bf16.msra.mxu0 0
  %977 = vmatprep.subr.bf16.mxu0 0
  %978 = vmatpush1.bf16.msra.mxu0 0
  %979 = vmatprep.subr.bf16.mxu0 0
  %980 = vmatpush1.bf16.msra.mxu0 0
  %981 = vmatprep.subr.bf16.mxu0 0
  %982 = vmatpush1.bf16.msra.mxu0 0
  %983 = vmatprep.subr.bf16.mxu0 0
  %984 = vmatpush1.bf16.msra.mxu0 0
  %985 = vmatprep.subr.bf16.mxu0 0
  %986 = vmatpush1.bf16.msra.mxu0 0
  %987 = vmatprep.mubr.bf16.mxu0 0
  %988 = vmatmul.mubr.bf16.gmra.mrb[0].mxu0 %v954
  %v989 = vpop.f32.mrb[0].mxu0
  %v990 = vadd.f32 0.0, %v989
  %v991 = vpop.f32.mrb[0].mxu0
  %v992 = vadd.f32 0.0, %v991
  %v993 = vpop.f32.mrb[0].mxu0
  %v994 = vpop.f32.mrb[0].mxu0
  %995 = vdwg.mxu0
  %996 = vmatprep.subr.bf16.mxu0 %v158
  %997 = vmatpush1.bf16.msra.mxu0 %v157
  %998 = vmatprep.subr.bf16.mxu0 %v162
  %999 = vmatpush1.bf16.msra.mxu0 %v161
  %1000 = vmatprep.subr.bf16.mxu0 %v166
  %1001 = vmatpush1.bf16.msra.mxu0 %v165
  %1002 = vmatprep.subr.bf16.mxu0 %v170
  %1003 = vmatpush1.bf16.msra.mxu0 %v169
  %1004 = vmatprep.subr.bf16.mxu0 %v174
  %1005 = vmatpush1.bf16.msra.mxu0 %v173
  %1006 = vmatprep.subr.bf16.mxu0 %v178
  %1007 = vmatpush1.bf16.msra.mxu0 %v177
  %1008 = vmatprep.subr.bf16.mxu0 %v182
  %1009 = vmatpush1.bf16.msra.mxu0 %v181
  %1010 = vmatprep.subr.bf16.mxu0 %v186
  %1011 = vmatpush1.bf16.msra.mxu0 %v185
  %1012 = vmatprep.subr.bf16.mxu0 0
  %1013 = vmatpush1.bf16.msra.mxu0 0
  %1014 = vmatprep.subr.bf16.mxu0 0
  %1015 = vmatpush1.bf16.msra.mxu0 0
  %1016 = vmatprep.subr.bf16.mxu0 0
  %1017 = vmatpush1.bf16.msra.mxu0 0
  %1018 = vmatprep.subr.bf16.mxu0 0
  %1019 = vmatpush1.bf16.msra.mxu0 0
  %1020 = vmatprep.subr.bf16.mxu0 0
  %1021 = vmatpush1.bf16.msra.mxu0 0
  %1022 = vmatprep.subr.bf16.mxu0 0
  %1023 = vmatpush1.bf16.msra.mxu0 0
  %1024 = vmatprep.subr.bf16.mxu0 0
  %1025 = vmatpush1.bf16.msra.mxu0 0
  %1026 = vmatprep.subr.bf16.mxu0 0
  %1027 = vmatpush1.bf16.msra.mxu0 0
  %1028 = vmatprep.mubr.bf16.mxu0 0
  %1029 = vmatmul.mubr.bf16.gmra.mrb[0].mxu0 %v954
  %v1030 = vpop.f32.mrb[0].mxu0
  %v1031 = vadd.f32 0.0, %v1030
  %v1032 = vpop.f32.mrb[0].mxu0
  %v1033 = vadd.f32 0.0, %v1032
  %v1034 = vpop.f32.mrb[0].mxu0
  %v1035 = vpop.f32.mrb[0].mxu0
  %1036 = vdwg.mxu0
  %v1037 = vadd.f32 %v950, %v990
  %v1038 = vadd.f32 %v951, %v992
  %v1039 = vadd.f32 %v952, %v1031
  %v1040 = vadd.f32 %v953, %v1033
  %v1041 = vxor.u32 %v1037, 2147483648
  %v1042 = vxor.u32 %v1038, 2147483648
  %v1043 = vxor.u32 %v1039, 2147483648
  %v1044 = vmul.f32 %v1041, 1.442695
  %v1045 = vpow.pop %v1044
  %v1046 = vmul.f32 %v1042, 1.442695
  %v1047 = vpow.pop %v1046
  %v1048 = vmul.f32 %v1043, 1.442695
  %v1049 = vpow.pop %v1048
  %v1050 = vadd.f32 %v1045, 1.0
  %v1051 = vadd.f32 %v1047, 1.0
  %v1052 = vadd.f32 %v1049, 1.0
  %v1053 = vrcp.pop %v1050
  %v1054 = vmul.f32 1.0, %v1053
  %v1055 = vrcp.pop %v1051
  %v1056 = vmul.f32 1.0, %v1055
  %v1057 = vrcp.pop %v1052
  %v1058 = vmul.f32 1.0, %v1057
  %v1059 = vtanh.pop %v1040
  %v1060 = vmul.f32 %v1056, %v878
  %v1061 = vmul.f32 %v1054, %v1059
  %v1062 = vadd.f32 %v1060, %v1061
  %v1063 = vtanh.pop %v1062
  %v1064 = vmul.f32 %v1058, %v1063
  %v1066 = vcombine.high %v1064, %v1064
  %v1068 = vunpack.c.l.s4 1966171168
  %v1069 = vunpack.c.0.s8 %v1068
  %v1070 = vlaneseq
  %v1071 = vshrl.u32 %v1070, 7
  %v1072 = vsub.s32 %v1069, %v1071
  %v1073 = vrot.slane %v1064, %v1072
  %v1075 = vunpack.c.l.s4 1966171168
  %v1076 = vunpack.c.0.s8 %v1075
  %v1077 = vlaneseq
  %v1078 = vshrl.u32 %v1077, 7
  %v1079 = vsub.s32 %v1076, %v1078
  %v1080 = vrot.slane %v1066, %v1079
  %v1081 = vcombine.high %v1073, %v1073
  %v1082 = vcombine.high %v1080, %v1080
  %v1084 = vunpack.c.l.s4 1966171168
  %v1085 = vunpack.c.0.s8 %v1084
  %v1086 = vlaneseq
  %v1087 = vshrl.u32 %v1086, 7
  %v1088 = vsub.s32 %v1085, %v1087
  %v1089 = vrot.slane %v1073, %v1088
  %v1091 = vunpack.c.l.s4 1966171168
  %v1092 = vunpack.c.0.s8 %v1091
  %v1093 = vlaneseq
  %v1094 = vshrl.u32 %v1093, 7
  %v1095 = vsub.s32 %v1092, %v1094
  %v1096 = vrot.slane %v1080, %v1095
  %v1098 = vunpack.c.l.s4 1966171168
  %v1099 = vunpack.c.0.s8 %v1098
  %v1100 = vlaneseq
  %v1101 = vshrl.u32 %v1100, 7
  %v1102 = vsub.s32 %v1099, %v1101
  %v1103 = vrot.slane %v1081, %v1102
  %v1105 = vunpack.c.l.s4 1966171168
  %v1106 = vunpack.c.0.s8 %v1105
  %v1107 = vlaneseq
  %v1108 = vshrl.u32 %v1107, 7
  %v1109 = vsub.s32 %v1106, %v1108
  %v1110 = vrot.slane %v1082, %v1109
  %v1111 = vcombine.high %v1089, %v1089
  %v1112 = vcombine.high %v1096, %v1096
  %v1113 = vcombine.high %v1103, %v1103
  %v1114 = vcombine.high %v1110, %v1110
  %1123 = vst [vmem:[%s2 + $0x4] sm:$0x1] %v1089
  %1124 = vst [vmem:[%s2 + $0xc] sm:$0x1] %v1103
  %1125 = vst [vmem:[%s2 + $0x14] sm:$0x1] %v1111
  %1126 = vst [vmem:[%s2 + $0x1c] sm:$0x1] %v1113
  %1127 = vst [vmem:[%s2 + $0x24] sm:$0x1] %v1096
  %1128 = vst [vmem:[%s2 + $0x2c] sm:$0x1] %v1110
  %1129 = vst [vmem:[%s2 + $0x34] sm:$0x1] %v1112
  %1130 = vst [vmem:[%s2 + $0x3c] sm:$0x1] %v1114
  %s1131 = scalar_lea.vmem %s0, 80
  %v1132 = vld [vmem:[%s1131] sm:$0xff]
  %v1133 = vld [vmem:[%s1131 + $0x8] sm:$0xff]
  %v1134 = vunpack.c.l.bf16 %v1132
  %v1135 = vunpack.c.h.bf16 %v1132
  %v1136 = vunpack.c.l.bf16 %v1133
  %v1137 = vunpack.c.h.bf16 %v1133
  %v1138 = vpack.c.bf16 %v1064, %v1064
  %1139 = vmatprep.subr.bf16.mxu0 %v156
  %1140 = vmatpush1.bf16.msra.mxu0 %v155
  %1141 = vmatprep.subr.bf16.mxu0 %v160
  %1142 = vmatpush1.bf16.msra.mxu0 %v159
  %1143 = vmatprep.subr.bf16.mxu0 %v164
  %1144 = vmatpush1.bf16.msra.mxu0 %v163
  %1145 = vmatprep.subr.bf16.mxu0 %v168
  %1146 = vmatpush1.bf16.msra.mxu0 %v167
  %1147 = vmatprep.subr.bf16.mxu0 %v172
  %1148 = vmatpush1.bf16.msra.mxu0 %v171
  %1149 = vmatprep.subr.bf16.mxu0 %v176
  %1150 = vmatpush1.bf16.msra.mxu0 %v175
  %1151 = vmatprep.subr.bf16.mxu0 %v180
  %1152 = vmatpush1.bf16.msra.mxu0 %v179
  %1153 = vmatprep.subr.bf16.mxu0 %v184
  %1154 = vmatpush1.bf16.msra.mxu0 %v183
  %1155 = vmatprep.subr.bf16.mxu0 0
  %1156 = vmatpush1.bf16.msra.mxu0 0
  %1157 = vmatprep.subr.bf16.mxu0 0
  %1158 = vmatpush1.bf16.msra.mxu0 0
  %1159 = vmatprep.subr.bf16.mxu0 0
  %1160 = vmatpush1.bf16.msra.mxu0 0
  %1161 = vmatprep.subr.bf16.mxu0 0
  %1162 = vmatpush1.bf16.msra.mxu0 0
  %1163 = vmatprep.subr.bf16.mxu0 0
  %1164 = vmatpush1.bf16.msra.mxu0 0
  %1165 = vmatprep.subr.bf16.mxu0 0
  %1166 = vmatpush1.bf16.msra.mxu0 0
  %1167 = vmatprep.subr.bf16.mxu0 0
  %1168 = vmatpush1.bf16.msra.mxu0 0
  %1169 = vmatprep.subr.bf16.mxu0 0
  %1170 = vmatpush1.bf16.msra.mxu0 0
  %1171 = vmatprep.mubr.bf16.mxu0 0
  %1172 = vmatmul.mubr.bf16.gmra.mrb[0].mxu0 %v1138
  %v1173 = vpop.f32.mrb[0].mxu0
  %v1174 = vadd.f32 0.0, %v1173
  %v1175 = vpop.f32.mrb[0].mxu0
  %v1176 = vadd.f32 0.0, %v1175
  %v1177 = vpop.f32.mrb[0].mxu0
  %v1178 = vpop.f32.mrb[0].mxu0
  %1179 = vdwg.mxu0
  %1180 = vmatprep.subr.bf16.mxu0 %v158
  %1181 = vmatpush1.bf16.msra.mxu0 %v157
  %1182 = vmatprep.subr.bf16.mxu0 %v162
  %1183 = vmatpush1.bf16.msra.mxu0 %v161
  %1184 = vmatprep.subr.bf16.mxu0 %v166
  %1185 = vmatpush1.bf16.msra.mxu0 %v165
  %1186 = vmatprep.subr.bf16.mxu0 %v170
  %1187 = vmatpush1.bf16.msra.mxu0 %v169
  %1188 = vmatprep.subr.bf16.mxu0 %v174
  %1189 = vmatpush1.bf16.msra.mxu0 %v173
  %1190 = vmatprep.subr.bf16.mxu0 %v178
  %1191 = vmatpush1.bf16.msra.mxu0 %v177
  %1192 = vmatprep.subr.bf16.mxu0 %v182
  %1193 = vmatpush1.bf16.msra.mxu0 %v181
  %1194 = vmatprep.subr.bf16.mxu0 %v186
  %1195 = vmatpush1.bf16.msra.mxu0 %v185
  %1196 = vmatprep.subr.bf16.mxu0 0
  %1197 = vmatpush1.bf16.msra.mxu0 0
  %1198 = vmatprep.subr.bf16.mxu0 0
  %1199 = vmatpush1.bf16.msra.mxu0 0
  %1200 = vmatprep.subr.bf16.mxu0 0
  %1201 = vmatpush1.bf16.msra.mxu0 0
  %1202 = vmatprep.subr.bf16.mxu0 0
  %1203 = vmatpush1.bf16.msra.mxu0 0
  %1204 = vmatprep.subr.bf16.mxu0 0
  %1205 = vmatpush1.bf16.msra.mxu0 0
  %1206 = vmatprep.subr.bf16.mxu0 0
  %1207 = vmatpush1.bf16.msra.mxu0 0
  %1208 = vmatprep.subr.bf16.mxu0 0
  %1209 = vmatpush1.bf16.msra.mxu0 0
  %1210 = vmatprep.subr.bf16.mxu0 0
  %1211 = vmatpush1.bf16.msra.mxu0 0
  %1212 = vmatprep.mubr.bf16.mxu0 0
  %1213 = vmatmul.mubr.bf16.gmra.mrb[0].mxu0 %v1138
  %v1214 = vpop.f32.mrb[0].mxu0
  %v1215 = vadd.f32 0.0, %v1214
  %v1216 = vpop.f32.mrb[0].mxu0
  %v1217 = vadd.f32 0.0, %v1216
  %v1218 = vpop.f32.mrb[0].mxu0
  %v1219 = vpop.f32.mrb[0].mxu0
  %1220 = vdwg.mxu0
  %v1221 = vadd.f32 %v1134, %v1174
  %v1222 = vadd.f32 %v1135, %v1176
  %v1223 = vadd.f32 %v1136, %v1215
  %v1224 = vadd.f32 %v1137, %v1217
  %v1225 = vxor.u32 %v1221, 2147483648
  %v1226 = vxor.u32 %v1222, 2147483648
  %v1227 = vxor.u32 %v1223, 2147483648
  %v1228 = vmul.f32 %v1225, 1.442695
  %v1229 = vpow.pop %v1228
  %v1230 = vmul.f32 %v1226, 1.442695
  %v1231 = vpow.pop %v1230
  %v1232 = vmul.f32 %v1227, 1.442695
  %v1233 = vpow.pop %v1232
  %v1234 = vadd.f32 %v1229, 1.0
  %v1235 = vadd.f32 %v1231, 1.0
  %v1236 = vadd.f32 %v1233, 1.0
  %v1237 = vrcp.pop %v1234
  %v1238 = vmul.f32 1.0, %v1237
  %v1239 = vrcp.pop %v1235
  %v1240 = vmul.f32 1.0, %v1239
  %v1241 = vrcp.pop %v1236
  %v1242 = vmul.f32 1.0, %v1241
  %v1243 = vtanh.pop %v1224
  %v1244 = vmul.f32 %v1240, %v1062
  %v1245 = vmul.f32 %v1238, %v1243
  %v1246 = vadd.f32 %v1244, %v1245
  %v1247 = vtanh.pop %v1246
  %v1248 = vmul.f32 %v1242, %v1247
  %v1250 = vcombine.high %v1248, %v1248
  %v1252 = vunpack.c.l.s4 1966171168
  %v1253 = vunpack.c.0.s8 %v1252
  %v1254 = vlaneseq
  %v1255 = vshrl.u32 %v1254, 7
  %v1256 = vsub.s32 %v1253, %v1255
  %v1257 = vrot.slane %v1248, %v1256
  %v1259 = vunpack.c.l.s4 1966171168
  %v1260 = vunpack.c.0.s8 %v1259
  %v1261 = vlaneseq
  %v1262 = vshrl.u32 %v1261, 7
  %v1263 = vsub.s32 %v1260, %v1262
  %v1264 = vrot.slane %v1250, %v1263
  %v1265 = vcombine.high %v1257, %v1257
  %v1266 = vcombine.high %v1264, %v1264
  %v1268 = vunpack.c.l.s4 1966171168
  %v1269 = vunpack.c.0.s8 %v1268
  %v1270 = vlaneseq
  %v1271 = vshrl.u32 %v1270, 7
  %v1272 = vsub.s32 %v1269, %v1271
  %v1273 = vrot.slane %v1257, %v1272
  %v1275 = vunpack.c.l.s4 1966171168
  %v1276 = vunpack.c.0.s8 %v1275
  %v1277 = vlaneseq
  %v1278 = vshrl.u32 %v1277, 7
  %v1279 = vsub.s32 %v1276, %v1278
  %v1280 = vrot.slane %v1264, %v1279
  %v1282 = vunpack.c.l.s4 1966171168
  %v1283 = vunpack.c.0.s8 %v1282
  %v1284 = vlaneseq
  %v1285 = vshrl.u32 %v1284, 7
  %v1286 = vsub.s32 %v1283, %v1285
  %v1287 = vrot.slane %v1265, %v1286
  %v1289 = vunpack.c.l.s4 1966171168
  %v1290 = vunpack.c.0.s8 %v1289
  %v1291 = vlaneseq
  %v1292 = vshrl.u32 %v1291, 7
  %v1293 = vsub.s32 %v1290, %v1292
  %v1294 = vrot.slane %v1266, %v1293
  %v1295 = vcombine.high %v1273, %v1273
  %v1296 = vcombine.high %v1280, %v1280
  %v1297 = vcombine.high %v1287, %v1287
  %v1298 = vcombine.high %v1294, %v1294
  %1307 = vst [vmem:[%s2 + $0x5] sm:$0x1] %v1273
  %1308 = vst [vmem:[%s2 + $0xd] sm:$0x1] %v1287
  %1309 = vst [vmem:[%s2 + $0x15] sm:$0x1] %v1295
  %1310 = vst [vmem:[%s2 + $0x1d] sm:$0x1] %v1297
  %1311 = vst [vmem:[%s2 + $0x25] sm:$0x1] %v1280
  %1312 = vst [vmem:[%s2 + $0x2d] sm:$0x1] %v1294
  %1313 = vst [vmem:[%s2 + $0x35] sm:$0x1] %v1296
  %1314 = vst [vmem:[%s2 + $0x3d] sm:$0x1] %v1298
  %s1315 = scalar_lea.vmem %s0, 96
  %v1316 = vld [vmem:[%s1315] sm:$0xff]
  %v1317 = vld [vmem:[%s1315 + $0x8] sm:$0xff]
  %v1318 = vunpack.c.l.bf16 %v1316
  %v1319 = vunpack.c.h.bf16 %v1316
  %v1320 = vunpack.c.l.bf16 %v1317
  %v1321 = vunpack.c.h.bf16 %v1317
  %v1322 = vpack.c.bf16 %v1248, %v1248
  %1323 = vmatprep.subr.bf16.mxu0 %v156
  %1324 = vmatpush1.bf16.msra.mxu0 %v155
  %1325 = vmatprep.subr.bf16.mxu0 %v160
  %1326 = vmatpush1.bf16.msra.mxu0 %v159
  %1327 = vmatprep.subr.bf16.mxu0 %v164
  %1328 = vmatpush1.bf16.msra.mxu0 %v163
  %1329 = vmatprep.subr.bf16.mxu0 %v168
  %1330 = vmatpush1.bf16.msra.mxu0 %v167
  %1331 = vmatprep.subr.bf16.mxu0 %v172
  %1332 = vmatpush1.bf16.msra.mxu0 %v171
  %1333 = vmatprep.subr.bf16.mxu0 %v176
  %1334 = vmatpush1.bf16.msra.mxu0 %v175
  %1335 = vmatprep.subr.bf16.mxu0 %v180
  %1336 = vmatpush1.bf16.msra.mxu0 %v179
  %1337 = vmatprep.subr.bf16.mxu0 %v184
  %1338 = vmatpush1.bf16.msra.mxu0 %v183
  %1339 = vmatprep.subr.bf16.mxu0 0
  %1340 = vmatpush1.bf16.msra.mxu0 0
  %1341 = vmatprep.subr.bf16.mxu0 0
  %1342 = vmatpush1.bf16.msra.mxu0 0
  %1343 = vmatprep.subr.bf16.mxu0 0
  %1344 = vmatpush1.bf16.msra.mxu0 0
  %1345 = vmatprep.subr.bf16.mxu0 0
  %1346 = vmatpush1.bf16.msra.mxu0 0
  %1347 = vmatprep.subr.bf16.mxu0 0
  %1348 = vmatpush1.bf16.msra.mxu0 0
  %1349 = vmatprep.subr.bf16.mxu0 0
  %1350 = vmatpush1.bf16.msra.mxu0 0
  %1351 = vmatprep.subr.bf16.mxu0 0
  %1352 = vmatpush1.bf16.msra.mxu0 0
  %1353 = vmatprep.subr.bf16.mxu0 0
  %1354 = vmatpush1.bf16.msra.mxu0 0
  %1355 = vmatprep.mubr.bf16.mxu0 0
  %1356 = vmatmul.mubr.bf16.gmra.mrb[0].mxu0 %v1322
  %v1357 = vpop.f32.mrb[0].mxu0
  %v1358 = vadd.f32 0.0, %v1357
  %v1359 = vpop.f32.mrb[0].mxu0
  %v1360 = vadd.f32 0.0, %v1359
  %v1361 = vpop.f32.mrb[0].mxu0
  %v1362 = vpop.f32.mrb[0].mxu0
  %1363 = vdwg.mxu0
  %1364 = vmatprep.subr.bf16.mxu0 %v158
  %1365 = vmatpush1.bf16.msra.mxu0 %v157
  %1366 = vmatprep.subr.bf16.mxu0 %v162
  %1367 = vmatpush1.bf16.msra.mxu0 %v161
  %1368 = vmatprep.subr.bf16.mxu0 %v166
  %1369 = vmatpush1.bf16.msra.mxu0 %v165
  %1370 = vmatprep.subr.bf16.mxu0 %v170
  %1371 = vmatpush1.bf16.msra.mxu0 %v169
  %1372 = vmatprep.subr.bf16.mxu0 %v174
  %1373 = vmatpush1.bf16.msra.mxu0 %v173
  %1374 = vmatprep.subr.bf16.mxu0 %v178
  %1375 = vmatpush1.bf16.msra.mxu0 %v177
  %1376 = vmatprep.subr.bf16.mxu0 %v182
  %1377 = vmatpush1.bf16.msra.mxu0 %v181
  %1378 = vmatprep.subr.bf16.mxu0 %v186
  %1379 = vmatpush1.bf16.msra.mxu0 %v185
  %1380 = vmatprep.subr.bf16.mxu0 0
  %1381 = vmatpush1.bf16.msra.mxu0 0
  %1382 = vmatprep.subr.bf16.mxu0 0
  %1383 = vmatpush1.bf16.msra.mxu0 0
  %1384 = vmatprep.subr.bf16.mxu0 0
  %1385 = vmatpush1.bf16.msra.mxu0 0
  %1386 = vmatprep.subr.bf16.mxu0 0
  %1387 = vmatpush1.bf16.msra.mxu0 0
  %1388 = vmatprep.subr.bf16.mxu0 0
  %1389 = vmatpush1.bf16.msra.mxu0 0
  %1390 = vmatprep.subr.bf16.mxu0 0
  %1391 = vmatpush1.bf16.msra.mxu0 0
  %1392 = vmatprep.subr.bf16.mxu0 0
  %1393 = vmatpush1.bf16.msra.mxu0 0
  %1394 = vmatprep.subr.bf16.mxu0 0
  %1395 = vmatpush1.bf16.msra.mxu0 0
  %1396 = vmatprep.mubr.bf16.mxu0 0
  %1397 = vmatmul.mubr.bf16.gmra.mrb[0].mxu0 %v1322
  %v1398 = vpop.f32.mrb[0].mxu0
  %v1399 = vadd.f32 0.0, %v1398
  %v1400 = vpop.f32.mrb[0].mxu0
  %v1401 = vadd.f32 0.0, %v1400
  %v1402 = vpop.f32.mrb[0].mxu0
  %v1403 = vpop.f32.mrb[0].mxu0
  %1404 = vdwg.mxu0
  %v1405 = vadd.f32 %v1318, %v1358
  %v1406 = vadd.f32 %v1319, %v1360
  %v1407 = vadd.f32 %v1320, %v1399
  %v1408 = vadd.f32 %v1321, %v1401
  %v1409 = vxor.u32 %v1405, 2147483648
  %v1410 = vxor.u32 %v1406, 2147483648
  %v1411 = vxor.u32 %v1407, 2147483648
  %v1412 = vmul.f32 %v1409, 1.442695
  %v1413 = vpow.pop %v1412
  %v1414 = vmul.f32 %v1410, 1.442695
  %v1415 = vpow.pop %v1414
  %v1416 = vmul.f32 %v1411, 1.442695
  %v1417 = vpow.pop %v1416
  %v1418 = vadd.f32 %v1413, 1.0
  %v1419 = vadd.f32 %v1415, 1.0
  %v1420 = vadd.f32 %v1417, 1.0
  %v1421 = vrcp.pop %v1418
  %v1422 = vmul.f32 1.0, %v1421
  %v1423 = vrcp.pop %v1419
  %v1424 = vmul.f32 1.0, %v1423
  %v1425 = vrcp.pop %v1420
  %v1426 = vmul.f32 1.0, %v1425
  %v1427 = vtanh.pop %v1408
  %v1428 = vmul.f32 %v1424, %v1246
  %v1429 = vmul.f32 %v1422, %v1427
  %v1430 = vadd.f32 %v1428, %v1429
  %v1431 = vtanh.pop %v1430
  %v1432 = vmul.f32 %v1426, %v1431
  %v1434 = vcombine.high %v1432, %v1432
  %v1436 = vunpack.c.l.s4 1966171168
  %v1437 = vunpack.c.0.s8 %v1436
  %v1438 = vlaneseq
  %v1439 = vshrl.u32 %v1438, 7
  %v1440 = vsub.s32 %v1437, %v1439
  %v1441 = vrot.slane %v1432, %v1440
  %v1443 = vunpack.c.l.s4 1966171168
  %v1444 = vunpack.c.0.s8 %v1443
  %v1445 = vlaneseq
  %v1446 = vshrl.u32 %v1445, 7
  %v1447 = vsub.s32 %v1444, %v1446
  %v1448 = vrot.slane %v1434, %v1447
  %v1449 = vcombine.high %v1441, %v1441
  %v1450 = vcombine.high %v1448, %v1448
  %v1452 = vunpack.c.l.s4 1966171168
  %v1453 = vunpack.c.0.s8 %v1452
  %v1454 = vlaneseq
  %v1455 = vshrl.u32 %v1454, 7
  %v1456 = vsub.s32 %v1453, %v1455
  %v1457 = vrot.slane %v1441, %v1456
  %v1459 = vunpack.c.l.s4 1966171168
  %v1460 = vunpack.c.0.s8 %v1459
  %v1461 = vlaneseq
  %v1462 = vshrl.u32 %v1461, 7
  %v1463 = vsub.s32 %v1460, %v1462
  %v1464 = vrot.slane %v1448, %v1463
  %v1466 = vunpack.c.l.s4 1966171168
  %v1467 = vunpack.c.0.s8 %v1466
  %v1468 = vlaneseq
  %v1469 = vshrl.u32 %v1468, 7
  %v1470 = vsub.s32 %v1467, %v1469
  %v1471 = vrot.slane %v1449, %v1470
  %v1473 = vunpack.c.l.s4 1966171168
  %v1474 = vunpack.c.0.s8 %v1473
  %v1475 = vlaneseq
  %v1476 = vshrl.u32 %v1475, 7
  %v1477 = vsub.s32 %v1474, %v1476
  %v1478 = vrot.slane %v1450, %v1477
  %v1479 = vcombine.high %v1457, %v1457
  %v1480 = vcombine.high %v1464, %v1464
  %v1481 = vcombine.high %v1471, %v1471
  %v1482 = vcombine.high %v1478, %v1478
  %1491 = vst [vmem:[%s2 + $0x6] sm:$0x1] %v1457
  %1492 = vst [vmem:[%s2 + $0xe] sm:$0x1] %v1471
  %1493 = vst [vmem:[%s2 + $0x16] sm:$0x1] %v1479
  %1494 = vst [vmem:[%s2 + $0x1e] sm:$0x1] %v1481
  %1495 = vst [vmem:[%s2 + $0x26] sm:$0x1] %v1464
  %1496 = vst [vmem:[%s2 + $0x2e] sm:$0x1] %v1478
  %1497 = vst [vmem:[%s2 + $0x36] sm:$0x1] %v1480
  %1498 = vst [vmem:[%s2 + $0x3e] sm:$0x1] %v1482
  %s1499 = scalar_lea.vmem %s0, 112
  %v1500 = vld [vmem:[%s1499] sm:$0xff]
  %v1501 = vld [vmem:[%s1499 + $0x8] sm:$0xff]
  %v1502 = vunpack.c.l.bf16 %v1500
  %v1503 = vunpack.c.h.bf16 %v1500
  %v1504 = vunpack.c.l.bf16 %v1501
  %v1505 = vunpack.c.h.bf16 %v1501
  %v1506 = vpack.c.bf16 %v1432, %v1432
  %1507 = vmatprep.subr.bf16.mxu0 %v156
  %1508 = vmatpush1.bf16.msra.mxu0 %v155
  %1509 = vmatprep.subr.bf16.mxu0 %v160
  %1510 = vmatpush1.bf16.msra.mxu0 %v159
  %1511 = vmatprep.subr.bf16.mxu0 %v164
  %1512 = vmatpush1.bf16.msra.mxu0 %v163
  %1513 = vmatprep.subr.bf16.mxu0 %v168
  %1514 = vmatpush1.bf16.msra.mxu0 %v167
  %1515 = vmatprep.subr.bf16.mxu0 %v172
  %1516 = vmatpush1.bf16.msra.mxu0 %v171
  %1517 = vmatprep.subr.bf16.mxu0 %v176
  %1518 = vmatpush1.bf16.msra.mxu0 %v175
  %1519 = vmatprep.subr.bf16.mxu0 %v180
  %1520 = vmatpush1.bf16.msra.mxu0 %v179
  %1521 = vmatprep.subr.bf16.mxu0 %v184
  %1522 = vmatpush1.bf16.msra.mxu0 %v183
  %1523 = vmatprep.subr.bf16.mxu0 0
  %1524 = vmatpush1.bf16.msra.mxu0 0
  %1525 = vmatprep.subr.bf16.mxu0 0
  %1526 = vmatpush1.bf16.msra.mxu0 0
  %1527 = vmatprep.subr.bf16.mxu0 0
  %1528 = vmatpush1.bf16.msra.mxu0 0
  %1529 = vmatprep.subr.bf16.mxu0 0
  %1530 = vmatpush1.bf16.msra.mxu0 0
  %1531 = vmatprep.subr.bf16.mxu0 0
  %1532 = vmatpush1.bf16.msra.mxu0 0
  %1533 = vmatprep.subr.bf16.mxu0 0
  %1534 = vmatpush1.bf16.msra.mxu0 0
  %1535 = vmatprep.subr.bf16.mxu0 0
  %1536 = vmatpush1.bf16.msra.mxu0 0
  %1537 = vmatprep.subr.bf16.mxu0 0
  %1538 = vmatpush1.bf16.msra.mxu0 0
  %1539 = vmatprep.mubr.bf16.mxu0 0
  %1540 = vmatmul.mubr.bf16.gmra.mrb[0].mxu0 %v1506
  %v1541 = vpop.f32.mrb[0].mxu0
  %v1542 = vadd.f32 0.0, %v1541
  %v1543 = vpop.f32.mrb[0].mxu0
  %v1544 = vadd.f32 0.0, %v1543
  %v1545 = vpop.f32.mrb[0].mxu0
  %v1546 = vpop.f32.mrb[0].mxu0
  %1547 = vdwg.mxu0
  %1548 = vmatprep.subr.bf16.mxu0 %v158
  %1549 = vmatpush1.bf16.msra.mxu0 %v157
  %1550 = vmatprep.subr.bf16.mxu0 %v162
  %1551 = vmatpush1.bf16.msra.mxu0 %v161
  %1552 = vmatprep.subr.bf16.mxu0 %v166
  %1553 = vmatpush1.bf16.msra.mxu0 %v165
  %1554 = vmatprep.subr.bf16.mxu0 %v170
  %1555 = vmatpush1.bf16.msra.mxu0 %v169
  %1556 = vmatprep.subr.bf16.mxu0 %v174
  %1557 = vmatpush1.bf16.msra.mxu0 %v173
  %1558 = vmatprep.subr.bf16.mxu0 %v178
  %1559 = vmatpush1.bf16.msra.mxu0 %v177
  %1560 = vmatprep.subr.bf16.mxu0 %v182
  %1561 = vmatpush1.bf16.msra.mxu0 %v181
  %1562 = vmatprep.subr.bf16.mxu0 %v186
  %1563 = vmatpush1.bf16.msra.mxu0 %v185
  %1564 = vmatprep.subr.bf16.mxu0 0
  %1565 = vmatpush1.bf16.msra.mxu0 0
  %1566 = vmatprep.subr.bf16.mxu0 0
  %1567 = vmatpush1.bf16.msra.mxu0 0
  %1568 = vmatprep.subr.bf16.mxu0 0
  %1569 = vmatpush1.bf16.msra.mxu0 0
  %1570 = vmatprep.subr.bf16.mxu0 0
  %1571 = vmatpush1.bf16.msra.mxu0 0
  %1572 = vmatprep.subr.bf16.mxu0 0
  %1573 = vmatpush1.bf16.msra.mxu0 0
  %1574 = vmatprep.subr.bf16.mxu0 0
  %1575 = vmatpush1.bf16.msra.mxu0 0
  %1576 = vmatprep.subr.bf16.mxu0 0
  %1577 = vmatpush1.bf16.msra.mxu0 0
  %1578 = vmatprep.subr.bf16.mxu0 0
  %1579 = vmatpush1.bf16.msra.mxu0 0
  %1580 = vmatprep.mubr.bf16.mxu0 0
  %1581 = vmatmul.mubr.bf16.gmra.mrb[0].mxu0 %v1506
  %v1582 = vpop.f32.mrb[0].mxu0
  %v1583 = vadd.f32 0.0, %v1582
  %v1584 = vpop.f32.mrb[0].mxu0
  %v1585 = vadd.f32 0.0, %v1584
  %v1586 = vpop.f32.mrb[0].mxu0
  %v1587 = vpop.f32.mrb[0].mxu0
  %1588 = vdwg.mxu0
  %v1589 = vadd.f32 %v1502, %v1542
  %v1590 = vadd.f32 %v1503, %v1544
  %v1591 = vadd.f32 %v1504, %v1583
  %v1592 = vadd.f32 %v1505, %v1585
  %v1593 = vxor.u32 %v1589, 2147483648
  %v1594 = vxor.u32 %v1590, 2147483648
  %v1595 = vxor.u32 %v1591, 2147483648
  %v1596 = vmul.f32 %v1593, 1.442695
  %v1597 = vpow.pop %v1596
  %v1598 = vmul.f32 %v1594, 1.442695
  %v1599 = vpow.pop %v1598
  %v1600 = vmul.f32 %v1595, 1.442695
  %v1601 = vpow.pop %v1600
  %v1602 = vadd.f32 %v1597, 1.0
  %v1603 = vadd.f32 %v1599, 1.0
  %v1604 = vadd.f32 %v1601, 1.0
  %v1605 = vrcp.pop %v1602
  %v1606 = vmul.f32 1.0, %v1605
  %v1607 = vrcp.pop %v1603
  %v1608 = vmul.f32 1.0, %v1607
  %v1609 = vrcp.pop %v1604
  %v1610 = vmul.f32 1.0, %v1609
  %v1611 = vtanh.pop %v1592
  %v1612 = vmul.f32 %v1608, %v1430
  %v1613 = vmul.f32 %v1606, %v1611
  %v1614 = vadd.f32 %v1612, %v1613
  %v1615 = vtanh.pop %v1614
  %v1616 = vmul.f32 %v1610, %v1615
  %v1618 = vcombine.high %v1616, %v1616
  %v1620 = vunpack.c.l.s4 1966171168
  %v1621 = vunpack.c.0.s8 %v1620
  %v1622 = vlaneseq
  %v1623 = vshrl.u32 %v1622, 7
  %v1624 = vsub.s32 %v1621, %v1623
  %v1625 = vrot.slane %v1616, %v1624
  %v1627 = vunpack.c.l.s4 1966171168
  %v1628 = vunpack.c.0.s8 %v1627
  %v1629 = vlaneseq
  %v1630 = vshrl.u32 %v1629, 7
  %v1631 = vsub.s32 %v1628, %v1630
  %v1632 = vrot.slane %v1618, %v1631
  %v1633 = vcombine.high %v1625, %v1625
  %v1634 = vcombine.high %v1632, %v1632
  %v1636 = vunpack.c.l.s4 1966171168
  %v1637 = vunpack.c.0.s8 %v1636
  %v1638 = vlaneseq
  %v1639 = vshrl.u32 %v1638, 7
  %v1640 = vsub.s32 %v1637, %v1639
  %v1641 = vrot.slane %v1625, %v1640
  %v1643 = vunpack.c.l.s4 1966171168
  %v1644 = vunpack.c.0.s8 %v1643
  %v1645 = vlaneseq
  %v1646 = vshrl.u32 %v1645, 7
  %v1647 = vsub.s32 %v1644, %v1646
  %v1648 = vrot.slane %v1632, %v1647
  %v1650 = vunpack.c.l.s4 1966171168
  %v1651 = vunpack.c.0.s8 %v1650
  %v1652 = vlaneseq
  %v1653 = vshrl.u32 %v1652, 7
  %v1654 = vsub.s32 %v1651, %v1653
  %v1655 = vrot.slane %v1633, %v1654
  %v1657 = vunpack.c.l.s4 1966171168
  %v1658 = vunpack.c.0.s8 %v1657
  %v1659 = vlaneseq
  %v1660 = vshrl.u32 %v1659, 7
  %v1661 = vsub.s32 %v1658, %v1660
  %v1662 = vrot.slane %v1634, %v1661
  %v1663 = vcombine.high %v1641, %v1641
  %v1664 = vcombine.high %v1648, %v1648
  %v1665 = vcombine.high %v1655, %v1655
  %v1666 = vcombine.high %v1662, %v1662
  %1675 = vst [vmem:[%s2 + $0x7] sm:$0x1] %v1641
  %1676 = vst [vmem:[%s2 + $0xf] sm:$0x1] %v1655
  %1677 = vst [vmem:[%s2 + $0x17] sm:$0x1] %v1663
  %1678 = vst [vmem:[%s2 + $0x1f] sm:$0x1] %v1665
  %1679 = vst [vmem:[%s2 + $0x27] sm:$0x1] %v1648
  %1680 = vst [vmem:[%s2 + $0x2f] sm:$0x1] %v1662
  %1681 = vst [vmem:[%s2 + $0x37] sm:$0x1] %v1664
  %1682 = vst [vmem:[%s2 + $0x3f] sm:$0x1] %v1666
  %1683 = vst [vmem:[#allocation2] sm:$0xff] %v1616
  %1684 = vst [vmem:[#allocation3] sm:$0xff] %v1614
  // Predicated region
  $region14: #{instruction_encoder_forward.1} parent=0 // pred_check
    _
  $region15: #{instruction_encoder_forward.1} parent=0 // pred_check_branch
    %1686 = sbr.rel (0) target = $region17
  $region16: #{instruction_encoder_forward.1} parent=0 // pred_region
    _
  $region17: #{instruction_encoder_forward.1} parent=0 // pred_fallthru
    _
  // Predicated region
  $region18: #{instruction_encoder_forward.1} parent=0 // pred_check
    _
  $region19: #{instruction_encoder_forward.1} parent=0 // pred_check_branch
    %1688 = sbr.rel (0) target = $region21
  $region20: #{instruction_encoder_forward.1} parent=0 // pred_region
    _
  $region21: #{instruction_encoder_forward.1} parent=0 // pred_fallthru
    _

</llo_original>
